<compile_context>
chip_gen: v5e
topology: v5e:2x2
jax: 0.10.0
libtpu: 0.0.40
codegen_flags: <defaults>
</compile_context>

<pallas_src>
import jax
import jax.numpy as jnp
from jax.experimental import pallas as pl
from jax.experimental.pallas import tpu as pltpu

NEG_SLOPE = 0.01   # PyTorch nn.LeakyReLU default
LANE = 128         # TPU lane width


def _leaky_relu(x):
    return jnp.where(x > 0, x, NEG_SLOPE * x)


def _round_up(n, m):
    return ((n + m - 1) // m) * m


def _pad2d(a, shape):
    return jnp.pad(a, [(0, s - d) for d, s in zip(a.shape, shape)])


# --------------------------------------------------------------------------- kernel
def discriminator_kernel(x_ref,
                         w1_ref, b1_ref,
                         w2_ref, b2_ref,
                         w3_ref, b3_ref,
                         w4_ref, b4_ref,
                         o_ref):
    """Whole MLP for one batch tile, fused on-chip.

    Matmuls run on the MXU in the weights' dtype (bf16) with f32 accumulation;
    bias + LeakyReLU happen on the f32 accumulator before any downcast.
    """
    x = x_ref[...]

    h = jnp.dot(x, w1_ref[...], preferred_element_type=jnp.float32) + b1_ref[...]
    h = _leaky_relu(h)

    h = jnp.dot(h.astype(w2_ref.dtype), w2_ref[...],
                preferred_element_type=jnp.float32) + b2_ref[...]
    h = _leaky_relu(h)

    h = jnp.dot(h.astype(w3_ref.dtype), w3_ref[...],
                preferred_element_type=jnp.float32) + b3_ref[...]
    h = _leaky_relu(h)

    # Final Linear(h_dim, 1): an N=1 MXU matmul wastes 255/256 of the array.
    # Do it as a VPU multiply + lane (XLU) reduction against the f32 row vector.
    out = jnp.sum(h * w4_ref[...], axis=-1, keepdims=True) + b4_ref[...]
    o_ref[...] = out.astype(o_ref.dtype)


# --------------------------------------------------------------------------- wrapper
def prepare_params(params, *, compute_dtype=jnp.bfloat16):
    """Pad params to lane-dense shapes and cast matmul weights to compute_dtype.

    In real use this is done once, offline, not per forward call.
    """
    w1, b1, w2, b2, w3, b3, w4, b4 = params
    z_dim, h_dim = w1.shape
    z_pad = _round_up(z_dim, LANE)
    h_pad = _round_up(h_dim, LANE)

    w1p = _pad2d(w1, (z_pad, h_pad)).astype(compute_dtype)
    w2p = _pad2d(w2, (h_pad, h_pad)).astype(compute_dtype)
    w3p = _pad2d(w3, (h_pad, h_pad)).astype(compute_dtype)
    b1p = _pad2d(b1, (1, h_pad)).astype(jnp.float32)
    b2p = _pad2d(b2, (1, h_pad)).astype(jnp.float32)
    b3p = _pad2d(b3, (1, h_pad)).astype(jnp.float32)
    # Final layer stored as an f32 row vector for the VPU multiply + reduce.
    w4row = _pad2d(w4.reshape(1, h_dim), (1, h_pad)).astype(jnp.float32)
    b4p = b4.reshape(1, 1).astype(jnp.float32)
    return (w1p, b1p, w2p, b2p, w3p, b3p, w4row, b4p), z_pad, h_pad


def _pick_batch_tile(B, sublane):
    """Moderate tile (<=256 rows), >=2 grid steps when the batch allows, sublane-aligned."""
    b_aligned = _round_up(B, sublane)
    tile = max((min(256, b_aligned) // sublane) * sublane, sublane)
    if b_aligned >= 2 * sublane and -(-b_aligned // tile) < 2:
        tile = max((b_aligned // 2 // sublane) * sublane, sublane)
    return tile


def discriminator_forward(x, params, *, batch_tile=None,
                          compute_dtype=jnp.bfloat16,
                          single_buffer_weights=True):
    """x: (B, z_dim) float32. Returns (B,) float32 (matches output.view(-1))."""
    B, _ = x.shape
    prepped, z_pad, h_pad = prepare_params(params, compute_dtype=compute_dtype)
    w1p, b1p, w2p, b2p, w3p, b3p, w4row, b4p = prepped

    sublane = 16 if compute_dtype == jnp.bfloat16 else 8
    if batch_tile is None:
        batch_tile = _pick_batch_tile(B, sublane)
    assert batch_tile % sublane == 0, (
        f"batch_tile={batch_tile} must be a multiple of {sublane} for {compute_dtype}")

    B_pad = _round_up(B, batch_tile)
    grid = (B_pad // batch_tile,)

    # Pad batch rows and lanes; zero rows/lanes are inert and sliced off at the end.
    xp = _pad2d(x, (B_pad, z_pad)).astype(compute_dtype)

    weight_bytes = int(sum(a.nbytes for a in prepped))
    cost = pl.CostEstimate(
        flops=2 * B_pad * (z_pad * h_pad + 2 * h_pad * h_pad + h_pad),
        transcendentals=0,
        bytes_accessed=int(xp.nbytes) + weight_bytes + B_pad * 4,
    )
    vmem_limit = int(min(64 * 1024 * 1024,
                         2 * weight_bytes
                         + 4 * batch_tile * max(z_pad, h_pad) * 4
                         + (16 << 20)))

    def build(single_buffer):
        if single_buffer:
            # Constant-index weight blocks: keep them resident with a single VMEM
            # buffer instead of the default double-buffer (halves weight VMEM).
            def wspec(shape):
                return pl.BlockSpec(shape, lambda i: (0, 0),
                                    pipeline_mode=pl.Buffered(1))
        else:
            def wspec(shape):
                return pl.BlockSpec(shape, lambda i: (0, 0))

        return pl.pallas_call(
            discriminator_kernel,
            out_shape=jax.ShapeDtypeStruct((B_pad, 1), jnp.float32),
            grid_spec=pltpu.PrefetchScalarGridSpec(
                num_scalar_prefetch=0,
                grid=grid,
                in_specs=[
                    pl.BlockSpec((batch_tile, z_pad), lambda i: (i, 0)),  # x tile
                    wspec((z_pad, h_pad)), wspec((1, h_pad)),             # layer 1
                    wspec((h_pad, h_pad)), wspec((1, h_pad)),             # layer 2
                    wspec((h_pad, h_pad)), wspec((1, h_pad)),             # layer 3
                    wspec((1, h_pad)),     wspec((1, 1)),                 # layer 4 (row + bias)
                ],
                out_specs=pl.BlockSpec((batch_tile, 1), lambda i: (i, 0)),
            ),
            compiler_params=pltpu.CompilerParams(
                dimension_semantics=("parallel",),
                vmem_limit_bytes=vmem_limit,
            ),
            cost_estimate=cost,
        )

    args = (xp, w1p, b1p, w2p, b2p, w3p, b3p, w4row, b4p)
    if single_buffer_weights:
        try:
            out = jax.block_until_ready(build(True)(*args))
        except Exception:
            # Fallback if this Pallas build rejects Buffered(1) on pallas_call specs.
            out = build(False)(*args)
    else:
        out = build(False)(*args)

    return out.reshape(-1)[:B]   # output.view(-1)


# --------------------------------------------------------------------------- params / refs
def init_params(key, z_dim, h_dim):
    """Deterministic synthetic params, shapes as in the nn.Module __init__ (stored (in,out))."""
    ks = jax.random.split(key, 8)

    def lin(kw, kb, fan_in, fan_out):
        bound = 1.0 / jnp.sqrt(fan_in)
        w = jax.random.uniform(kw, (fan_in, fan_out), jnp.float32, -bound, bound)
        b = jax.random.uniform(kb, (1, fan_out), jnp.float32, -bound, bound)
        return w, b

    w1, b1 = lin(ks[0], ks[1], z_dim, h_dim)
    w2, b2 = lin(ks[2], ks[3], h_dim, h_dim)
    w3, b3 = lin(ks[4], ks[5], h_dim, h_dim)
    w4, b4 = lin(ks[6], ks[7], h_dim, 1)
    return (w1, b1, w2, b2, w3, b3, w4, b4)


def reference_forward(x, params):
    """Pure f32 reference matching the PyTorch module exactly."""
    w1, b1, w2, b2, w3, b3, w4, b4 = params
    h = jax.nn.leaky_relu(x @ w1 + b1, NEG_SLOPE)
    h = jax.nn.leaky_relu(h @ w2 + b2, NEG_SLOPE)
    h = jax.nn.leaky_relu(h @ w3 + b3, NEG_SLOPE)
    return (h @ w4 + b4).reshape(-1)


def reference_forward_quantized(x, params, compute_dtype=jnp.bfloat16):
    """Same math with the kernel's bf16 rounding of x / weights / inter-layer activations."""
    w1, b1, w2, b2, w3, b3, w4, b4 = params
    q = lambda a: a.astype(compute_dtype).astype(jnp.float32)
    h = jax.nn.leaky_relu(q(x) @ q(w1) + b1, NEG_SLOPE)
    h = jax.nn.leaky_relu(q(h) @ q(w2) + b2, NEG_SLOPE)
    h = jax.nn.leaky_relu(q(h) @ q(w3) + b3, NEG_SLOPE)
    return (h @ w4 + b4).reshape(-1)


if __name__ == "__main__":
    # Small demo shapes; batch is tiled 2 x 16 rows -> 2 grid steps (megacore-friendly).
    B, z_dim, h_dim = 32, 16, 32
    key = jax.random.PRNGKey(0)
    kx, kp = jax.random.split(key)
    x = jax.random.normal(kx, (B, z_dim), jnp.float32)
    params = init_params(kp, z_dim, h_dim)

    out = discriminator_forward(x, params)
    out = jax.block_until_ready(out)

    assert out.shape == (B,), out.shape
    ref_q = reference_forward_quantized(x, params)
    assert jnp.allclose(out, ref_q, atol=1e-3, rtol=1e-3), (
        "max |diff| vs quantized ref:", float(jnp.max(jnp.abs(out - ref_q))))
    ref = reference_forward(x, params)
    assert float(jnp.max(jnp.abs(out - ref))) < 5e-2, (
        "max |diff| vs f32 ref:", float(jnp.max(jnp.abs(out - ref))))
    print("KERNEL_OK")
</pallas_src>

<mosaic_0001>
module attributes {stable_mosaic.version = 11 : i64} {
  func.func @discriminator_kernel(%arg0: i32, %arg1: memref<16x128xbf16, #tpu.memory_space<vmem>>, %arg2: memref<128x128xbf16, #tpu.memory_space<vmem>>, %arg3: memref<1x128xf32, #tpu.memory_space<vmem>>, %arg4: memref<128x128xbf16, #tpu.memory_space<vmem>>, %arg5: memref<1x128xf32, #tpu.memory_space<vmem>>, %arg6: memref<128x128xbf16, #tpu.memory_space<vmem>>, %arg7: memref<1x128xf32, #tpu.memory_space<vmem>>, %arg8: memref<1x128xf32, #tpu.memory_space<vmem>>, %arg9: memref<1x1xf32, #tpu.memory_space<vmem>>, %arg10: memref<16x1xf32, #tpu.memory_space<vmem>>) attributes {dimension_semantics = [#tpu.dimension_semantics<parallel>], iteration_bounds = array<i64: 2>, scalar_prefetch = 0 : i64, scratch_operands = 0 : i64, tpu.core_type = #tpu.core_type<tc>, window_params = [{transform_indices = @transform_0, window_bounds = array<i64: 16, 128>}, {pipeline_mode = #tpu.pipeline_mode<synchronous>, transform_indices = @transform_1, window_bounds = array<i64: 128, 128>}, {pipeline_mode = #tpu.pipeline_mode<synchronous>, transform_indices = @transform_2, window_bounds = array<i64: 1, 128>}, {pipeline_mode = #tpu.pipeline_mode<synchronous>, transform_indices = @transform_3, window_bounds = array<i64: 128, 128>}, {pipeline_mode = #tpu.pipeline_mode<synchronous>, transform_indices = @transform_4, window_bounds = array<i64: 1, 128>}, {pipeline_mode = #tpu.pipeline_mode<synchronous>, transform_indices = @transform_5, window_bounds = array<i64: 128, 128>}, {pipeline_mode = #tpu.pipeline_mode<synchronous>, transform_indices = @transform_6, window_bounds = array<i64: 1, 128>}, {pipeline_mode = #tpu.pipeline_mode<synchronous>, transform_indices = @transform_7, window_bounds = array<i64: 1, 128>}, {pipeline_mode = #tpu.pipeline_mode<synchronous>, transform_indices = @transform_8, window_bounds = array<i64: 1, 1>}, {transform_indices = @transform_9, window_bounds = array<i64: 16, 1>}]} {
    %c0 = arith.constant 0 : index
    %c0_0 = arith.constant 0 : index
    %0 = vector.load %arg1[%c0, %c0_0] : memref<16x128xbf16, #tpu.memory_space<vmem>>, vector<16x128xbf16>
    %c0_1 = arith.constant 0 : index
    %c0_2 = arith.constant 0 : index
    %1 = vector.load %arg2[%c0_1, %c0_2] : memref<128x128xbf16, #tpu.memory_space<vmem>>, vector<128x128xbf16>
    %cst = arith.constant dense<0.000000e+00> : vector<16x128xf32>
    %2 = tpu.matmul %0, %1, %cst {dimension_numbers = #tpu.dot_dimension_numbers<[1], [0], [0], [1], [0, 0, 1, 1], [], []>} : vector<16x128xbf16>, vector<128x128xbf16>, vector<16x128xf32> -> vector<16x128xf32>
    %c0_3 = arith.constant 0 : index
    %c0_4 = arith.constant 0 : index
    %3 = vector.load %arg3[%c0_3, %c0_4] : memref<1x128xf32, #tpu.memory_space<vmem>>, vector<1x128xf32>
    %4 = vector.broadcast %3 : vector<1x128xf32> to vector<16x128xf32>
    %5 = arith.addf %2, %4 : vector<16x128xf32>
    %cst_5 = arith.constant 0.000000e+00 : f32
    %6 = vector.broadcast %cst_5 : f32 to vector<16x128xf32>
    %7 = arith.cmpf ogt, %5, %6 : vector<16x128xf32>
    %cst_6 = arith.constant 0.00999999977 : f32
    %8 = vector.broadcast %cst_6 : f32 to vector<16x128xf32>
    %9 = arith.mulf %8, %5 : vector<16x128xf32>
    %10 = arith.select %7, %5, %9 : vector<16x128xi1>, vector<16x128xf32>
    %11 = arith.truncf %10 : vector<16x128xf32> to vector<16x128xbf16>
    %c0_7 = arith.constant 0 : index
    %c0_8 = arith.constant 0 : index
    %12 = vector.load %arg4[%c0_7, %c0_8] : memref<128x128xbf16, #tpu.memory_space<vmem>>, vector<128x128xbf16>
    %cst_9 = arith.constant dense<0.000000e+00> : vector<16x128xf32>
    %13 = tpu.matmul %11, %12, %cst_9 {dimension_numbers = #tpu.dot_dimension_numbers<[1], [0], [0], [1], [0, 0, 1, 1], [], []>} : vector<16x128xbf16>, vector<128x128xbf16>, vector<16x128xf32> -> vector<16x128xf32>
    %c0_10 = arith.constant 0 : index
    %c0_11 = arith.constant 0 : index
    %14 = vector.load %arg5[%c0_10, %c0_11] : memref<1x128xf32, #tpu.memory_space<vmem>>, vector<1x128xf32>
    %15 = vector.broadcast %14 : vector<1x128xf32> to vector<16x128xf32>
    %16 = arith.addf %13, %15 : vector<16x128xf32>
    %cst_12 = arith.constant 0.000000e+00 : f32
    %17 = vector.broadcast %cst_12 : f32 to vector<16x128xf32>
    %18 = arith.cmpf ogt, %16, %17 : vector<16x128xf32>
    %cst_13 = arith.constant 0.00999999977 : f32
    %19 = vector.broadcast %cst_13 : f32 to vector<16x128xf32>
    %20 = arith.mulf %19, %16 : vector<16x128xf32>
    %21 = arith.select %18, %16, %20 : vector<16x128xi1>, vector<16x128xf32>
    %22 = arith.truncf %21 : vector<16x128xf32> to vector<16x128xbf16>
    %c0_14 = arith.constant 0 : index
    %c0_15 = arith.constant 0 : index
    %23 = vector.load %arg6[%c0_14, %c0_15] : memref<128x128xbf16, #tpu.memory_space<vmem>>, vector<128x128xbf16>
    %cst_16 = arith.constant dense<0.000000e+00> : vector<16x128xf32>
    %24 = tpu.matmul %22, %23, %cst_16 {dimension_numbers = #tpu.dot_dimension_numbers<[1], [0], [0], [1], [0, 0, 1, 1], [], []>} : vector<16x128xbf16>, vector<128x128xbf16>, vector<16x128xf32> -> vector<16x128xf32>
    %c0_17 = arith.constant 0 : index
    %c0_18 = arith.constant 0 : index
    %25 = vector.load %arg7[%c0_17, %c0_18] : memref<1x128xf32, #tpu.memory_space<vmem>>, vector<1x128xf32>
    %26 = vector.broadcast %25 : vector<1x128xf32> to vector<16x128xf32>
    %27 = arith.addf %24, %26 : vector<16x128xf32>
    %cst_19 = arith.constant 0.000000e+00 : f32
    %28 = vector.broadcast %cst_19 : f32 to vector<16x128xf32>
    %29 = arith.cmpf ogt, %27, %28 : vector<16x128xf32>
    %cst_20 = arith.constant 0.00999999977 : f32
    %30 = vector.broadcast %cst_20 : f32 to vector<16x128xf32>
    %31 = arith.mulf %30, %27 : vector<16x128xf32>
    %32 = arith.select %29, %27, %31 : vector<16x128xi1>, vector<16x128xf32>
    %c0_21 = arith.constant 0 : index
    %c0_22 = arith.constant 0 : index
    %33 = vector.load %arg8[%c0_21, %c0_22] : memref<1x128xf32, #tpu.memory_space<vmem>>, vector<1x128xf32>
    %34 = vector.broadcast %33 : vector<1x128xf32> to vector<16x128xf32>
    %35 = arith.mulf %32, %34 : vector<16x128xf32>
    %cst_23 = arith.constant dense<0.000000e+00> : vector<16xf32>
    %36 = vector.multi_reduction <add>, %35, %cst_23 [1] : vector<16x128xf32> to vector<16xf32>
    %37 = vector.shape_cast %36 : vector<16xf32> to vector<16x1xf32>
    %c0_24 = arith.constant 0 : index
    %c0_25 = arith.constant 0 : index
    %38 = vector.load %arg9[%c0_24, %c0_25] : memref<1x1xf32, #tpu.memory_space<vmem>>, vector<1x1xf32>
    %39 = vector.broadcast %38 : vector<1x1xf32> to vector<16x1xf32>
    %40 = arith.addf %37, %39 : vector<16x1xf32>
    %c0_26 = arith.constant 0 : index
    %c0_27 = arith.constant 0 : index
    %41 = vector.load %arg10[%c0_26, %c0_27] : memref<16x1xf32, #tpu.memory_space<vmem>>, vector<16x1xf32>
    tpu.vector_store %arg10[%c0_26, %c0_27], %40 {strides = array<i32>} : memref<16x1xf32, #tpu.memory_space<vmem>>, vector<16x1xf32>,
    return
  }
  func.func @transform_0(%arg0: i32) -> (i32, i32) {
    %c0_i32 = arith.constant 0 : i32
    %c0_i32_0 = arith.constant 0 : i32
    return %arg0, %c0_i32 : i32, i32
  }
  func.func @transform_1(%arg0: i32) -> (i32, i32) {
    %c0_i32 = arith.constant 0 : i32
    %c0_i32_0 = arith.constant 0 : i32
    %c0_i32_1 = arith.constant 0 : i32
    return %c0_i32, %c0_i32_0 : i32, i32
  }
  func.func @transform_2(%arg0: i32) -> (i32, i32) {
    %c0_i32 = arith.constant 0 : i32
    %c0_i32_0 = arith.constant 0 : i32
    %c0_i32_1 = arith.constant 0 : i32
    return %c0_i32, %c0_i32_0 : i32, i32
  }
  func.func @transform_3(%arg0: i32) -> (i32, i32) {
    %c0_i32 = arith.constant 0 : i32
    %c0_i32_0 = arith.constant 0 : i32
    %c0_i32_1 = arith.constant 0 : i32
    return %c0_i32, %c0_i32_0 : i32, i32
  }
  func.func @transform_4(%arg0: i32) -> (i32, i32) {
    %c0_i32 = arith.constant 0 : i32
    %c0_i32_0 = arith.constant 0 : i32
    %c0_i32_1 = arith.constant 0 : i32
    return %c0_i32, %c0_i32_0 : i32, i32
  }
  func.func @transform_5(%arg0: i32) -> (i32, i32) {
    %c0_i32 = arith.constant 0 : i32
    %c0_i32_0 = arith.constant 0 : i32
    %c0_i32_1 = arith.constant 0 : i32
    return %c0_i32, %c0_i32_0 : i32, i32
  }
  func.func @transform_6(%arg0: i32) -> (i32, i32) {
    %c0_i32 = arith.constant 0 : i32
    %c0_i32_0 = arith.constant 0 : i32
    %c0_i32_1 = arith.constant 0 : i32
    return %c0_i32, %c0_i32_0 : i32, i32
  }
  func.func @transform_7(%arg0: i32) -> (i32, i32) {
    %c0_i32 = arith.constant 0 : i32
    %c0_i32_0 = arith.constant 0 : i32
    %c0_i32_1 = arith.constant 0 : i32
    return %c0_i32, %c0_i32_0 : i32, i32
  }
  func.func @transform_8(%arg0: i32) -> (i32, i32) {
    %c0_i32 = arith.constant 0 : i32
    %c0_i32_0 = arith.constant 0 : i32
    %c0_i32_1 = arith.constant 0 : i32
    return %c0_i32, %c0_i32_0 : i32, i32
  }
  func.func @transform_9(%arg0: i32) -> (i32, i32) {
    %c0_i32 = arith.constant 0 : i32
    %c0_i32_0 = arith.constant 0 : i32
    return %arg0, %c0_i32 : i32, i32
  }
}

module attributes {stable_mosaic.version = 11 : i64} {
  func.func @discriminator_kernel(%arg0: i32, %arg1: memref<16x128xbf16, #tpu.memory_space<vmem>>, %arg2: memref<128x128xbf16, #tpu.memory_space<vmem>>, %arg3: memref<1x128xf32, #tpu.memory_space<vmem>>, %arg4: memref<128x128xbf16, #tpu.memory_space<vmem>>, %arg5: memref<1x128xf32, #tpu.memory_space<vmem>>, %arg6: memref<128x128xbf16, #tpu.memory_space<vmem>>, %arg7: memref<1x128xf32, #tpu.memory_space<vmem>>, %arg8: memref<1x128xf32, #tpu.memory_space<vmem>>, %arg9: memref<1x1xf32, #tpu.memory_space<vmem>>, %arg10: memref<16x1xf32, #tpu.memory_space<vmem>>) attributes {dimension_semantics = [#tpu.dimension_semantics<parallel>], iteration_bounds = array<i64: 2>, scalar_prefetch = 0 : i64, scratch_operands = 0 : i64, tpu.core_type = #tpu.core_type<tc>, window_params = [{transform_indices = @transform_0, window_bounds = array<i64: 16, 128>}, {pipeline_mode = #tpu.pipeline_mode<synchronous>, transform_indices = @transform_1, window_bounds = array<i64: 128, 128>}, {pipeline_mode = #tpu.pipeline_mode<synchronous>, transform_indices = @transform_2, window_bounds = array<i64: 1, 128>}, {pipeline_mode = #tpu.pipeline_mode<synchronous>, transform_indices = @transform_3, window_bounds = array<i64: 128, 128>}, {pipeline_mode = #tpu.pipeline_mode<synchronous>, transform_indices = @transform_4, window_bounds = array<i64: 1, 128>}, {pipeline_mode = #tpu.pipeline_mode<synchronous>, transform_indices = @transform_5, window_bounds = array<i64: 128, 128>}, {pipeline_mode = #tpu.pipeline_mode<synchronous>, transform_indices = @transform_6, window_bounds = array<i64: 1, 128>}, {pipeline_mode = #tpu.pipeline_mode<synchronous>, transform_indices = @transform_7, window_bounds = array<i64: 1, 128>}, {pipeline_mode = #tpu.pipeline_mode<synchronous>, transform_indices = @transform_8, window_bounds = array<i64: 1, 1>}, {transform_indices = @transform_9, window_bounds = array<i64: 16, 1>}]} {
    %c0 = arith.constant 0 : index
    %c0_0 = arith.constant 0 : index
    %0 = vector.load %arg1[%c0, %c0_0] : memref<16x128xbf16, #tpu.memory_space<vmem>>, vector<16x128xbf16>
    %c0_1 = arith.constant 0 : index
    %c0_2 = arith.constant 0 : index
    %1 = vector.load %arg2[%c0_1, %c0_2] : memref<128x128xbf16, #tpu.memory_space<vmem>>, vector<128x128xbf16>
    %cst = arith.constant dense<0.000000e+00> : vector<16x128xf32>
    %2 = tpu.matmul %0, %1, %cst {dimension_numbers = #tpu.dot_dimension_numbers<[1], [0], [0], [1], [0, 0, 1, 1], [], []>} : vector<16x128xbf16>, vector<128x128xbf16>, vector<16x128xf32> -> vector<16x128xf32>
    %c0_3 = arith.constant 0 : index
    %c0_4 = arith.constant 0 : index
    %3 = vector.load %arg3[%c0_3, %c0_4] : memref<1x128xf32, #tpu.memory_space<vmem>>, vector<1x128xf32>
    %4 = vector.broadcast %3 : vector<1x128xf32> to vector<16x128xf32>
    %5 = arith.addf %2, %4 : vector<16x128xf32>
    %cst_5 = arith.constant 0.000000e+00 : f32
    %6 = vector.broadcast %cst_5 : f32 to vector<16x128xf32>
    %7 = arith.cmpf ogt, %5, %6 : vector<16x128xf32>
    %cst_6 = arith.constant 0.00999999977 : f32
    %8 = vector.broadcast %cst_6 : f32 to vector<16x128xf32>
    %9 = arith.mulf %8, %5 : vector<16x128xf32>
    %10 = arith.select %7, %5, %9 : vector<16x128xi1>, vector<16x128xf32>
    %11 = arith.truncf %10 : vector<16x128xf32> to vector<16x128xbf16>
    %c0_7 = arith.constant 0 : index
    %c0_8 = arith.constant 0 : index
    %12 = vector.load %arg4[%c0_7, %c0_8] : memref<128x128xbf16, #tpu.memory_space<vmem>>, vector<128x128xbf16>
    %cst_9 = arith.constant dense<0.000000e+00> : vector<16x128xf32>
    %13 = tpu.matmul %11, %12, %cst_9 {dimension_numbers = #tpu.dot_dimension_numbers<[1], [0], [0], [1], [0, 0, 1, 1], [], []>} : vector<16x128xbf16>, vector<128x128xbf16>, vector<16x128xf32> -> vector<16x128xf32>
    %c0_10 = arith.constant 0 : index
    %c0_11 = arith.constant 0 : index
    %14 = vector.load %arg5[%c0_10, %c0_11] : memref<1x128xf32, #tpu.memory_space<vmem>>, vector<1x128xf32>
    %15 = vector.broadcast %14 : vector<1x128xf32> to vector<16x128xf32>
    %16 = arith.addf %13, %15 : vector<16x128xf32>
    %cst_12 = arith.constant 0.000000e+00 : f32
    %17 = vector.broadcast %cst_12 : f32 to vector<16x128xf32>
    %18 = arith.cmpf ogt, %16, %17 : vector<16x128xf32>
    %cst_13 = arith.constant 0.00999999977 : f32
    %19 = vector.broadcast %cst_13 : f32 to vector<16x128xf32>
    %20 = arith.mulf %19, %16 : vector<16x128xf32>
    %21 = arith.select %18, %16, %20 : vector<16x128xi1>, vector<16x128xf32>
    %22 = arith.truncf %21 : vector<16x128xf32> to vector<16x128xbf16>
    %c0_14 = arith.constant 0 : index
    %c0_15 = arith.constant 0 : index
    %23 = vector.load %arg6[%c0_14, %c0_15] : memref<128x128xbf16, #tpu.memory_space<vmem>>, vector<128x128xbf16>
    %cst_16 = arith.constant dense<0.000000e+00> : vector<16x128xf32>
    %24 = tpu.matmul %22, %23, %cst_16 {dimension_numbers = #tpu.dot_dimension_numbers<[1], [0], [0], [1], [0, 0, 1, 1], [], []>} : vector<16x128xbf16>, vector<128x128xbf16>, vector<16x128xf32> -> vector<16x128xf32>
    %c0_17 = arith.constant 0 : index
    %c0_18 = arith.constant 0 : index
    %25 = vector.load %arg7[%c0_17, %c0_18] : memref<1x128xf32, #tpu.memory_space<vmem>>, vector<1x128xf32>
    %26 = vector.broadcast %25 : vector<1x128xf32> to vector<16x128xf32>
    %27 = arith.addf %24, %26 : vector<16x128xf32>
    %cst_19 = arith.constant 0.000000e+00 : f32
    %28 = vector.broadcast %cst_19 : f32 to vector<16x128xf32>
    %29 = arith.cmpf ogt, %27, %28 : vector<16x128xf32>
    %cst_20 = arith.constant 0.00999999977 : f32
    %30 = vector.broadcast %cst_20 : f32 to vector<16x128xf32>
    %31 = arith.mulf %30, %27 : vector<16x128xf32>
    %32 = arith.select %29, %27, %31 : vector<16x128xi1>, vector<16x128xf32>
    %c0_21 = arith.constant 0 : index
    %c0_22 = arith.constant 0 : index
    %33 = vector.load %arg8[%c0_21, %c0_22] : memref<1x128xf32, #tpu.memory_space<vmem>>, vector<1x128xf32>
    %34 = vector.broadcast %33 : vector<1x128xf32> to vector<16x128xf32>
    %35 = arith.mulf %32, %34 : vector<16x128xf32>
    %cst_23 = arith.constant dense<0.000000e+00> : vector<16xf32>
    %36 = vector.multi_reduction <add>, %35, %cst_23 [1] : vector<16x128xf32> to vector<16xf32>
    %37 = vector.shape_cast %36 : vector<16xf32> to vector<16x1xf32>
    %c0_24 = arith.constant 0 : index
    %c0_25 = arith.constant 0 : index
    %38 = vector.load %arg9[%c0_24, %c0_25] : memref<1x1xf32, #tpu.memory_space<vmem>>, vector<1x1xf32>
    %39 = vector.broadcast %38 : vector<1x1xf32> to vector<16x1xf32>
    %40 = arith.addf %37, %39 : vector<16x1xf32>
    %c0_26 = arith.constant 0 : index
    %c0_27 = arith.constant 0 : index
    %41 = vector.load %arg10[%c0_26, %c0_27] : memref<16x1xf32, #tpu.memory_space<vmem>>, vector<16x1xf32>
    tpu.vector_store %arg10[%c0_26, %c0_27], %40 {strides = array<i32>} : memref<16x1xf32, #tpu.memory_space<vmem>>, vector<16x1xf32>,
    return
  }
  func.func @transform_0(%arg0: i32) -> (i32, i32) {
    %c0_i32 = arith.constant 0 : i32
    %c0_i32_0 = arith.constant 0 : i32
    return %arg0, %c0_i32 : i32, i32
  }
  func.func @transform_1(%arg0: i32) -> (i32, i32) {
    %c0_i32 = arith.constant 0 : i32
    %c0_i32_0 = arith.constant 0 : i32
    %c0_i32_1 = arith.constant 0 : i32
    return %c0_i32, %c0_i32_0 : i32, i32
  }
  func.func @transform_2(%arg0: i32) -> (i32, i32) {
    %c0_i32 = arith.constant 0 : i32
    %c0_i32_0 = arith.constant 0 : i32
    %c0_i32_1 = arith.constant 0 : i32
    return %c0_i32, %c0_i32_0 : i32, i32
  }
  func.func @transform_3(%arg0: i32) -> (i32, i32) {
    %c0_i32 = arith.constant 0 : i32
    %c0_i32_0 = arith.constant 0 : i32
    %c0_i32_1 = arith.constant 0 : i32
    return %c0_i32, %c0_i32_0 : i32, i32
  }
  func.func @transform_4(%arg0: i32) -> (i32, i32) {
    %c0_i32 = arith.constant 0 : i32
    %c0_i32_0 = arith.constant 0 : i32
    %c0_i32_1 = arith.constant 0 : i32
    return %c0_i32, %c0_i32_0 : i32, i32
  }
  func.func @transform_5(%arg0: i32) -> (i32, i32) {
    %c0_i32 = arith.constant 0 : i32
    %c0_i32_0 = arith.constant 0 : i32
    %c0_i32_1 = arith.constant 0 : i32
    return %c0_i32, %c0_i32_0 : i32, i32
  }
  func.func @transform_6(%arg0: i32) -> (i32, i32) {
    %c0_i32 = arith.constant 0 : i32
    %c0_i32_0 = arith.constant 0 : i32
    %c0_i32_1 = arith.constant 0 : i32
    return %c0_i32, %c0_i32_0 : i32, i32
  }
  func.func @transform_7(%arg0: i32) -> (i32, i32) {
    %c0_i32 = arith.constant 0 : i32
    %c0_i32_0 = arith.constant 0 : i32
    %c0_i32_1 = arith.constant 0 : i32
    return %c0_i32, %c0_i32_0 : i32, i32
  }
  func.func @transform_8(%arg0: i32) -> (i32, i32) {
    %c0_i32 = arith.constant 0 : i32
    %c0_i32_0 = arith.constant 0 : i32
    %c0_i32_1 = arith.constant 0 : i32
    return %c0_i32, %c0_i32_0 : i32, i32
  }
  func.func @transform_9(%arg0: i32) -> (i32, i32) {
    %c0_i32 = arith.constant 0 : i32
    %c0_i32_0 = arith.constant 0 : i32
    return %arg0, %c0_i32 : i32, i32
  }
}

</mosaic_0001>

<llo_original>
// kernel: tpu_custom_call.1
$region0: #{tpu_custom_call.1}
  #allocation0 [shape = 'u32[]', space=smem, size = 0x4, offset = 0x4, fixed_abs, tag = 'smem constant byte address 0x4 - core index']
  #allocation1 [shape = 'u32[72,128]{1,0:T(1,128)}', space=vmem, size = 0x9000, scoped, tag = 'internal scratch']
  #allocation2 [shape = 'f32[1,1]{1,0:T(1,128)S(1)}', space=vmem, size = 0x200, scoped, tag = 'scoped memory for tpu_custom_call.1']
  %s0 = inlined_call_operand.hbm [shape: bf16[32,128], index: 0, kind: input, shape index: {}]
  %s1 = inlined_call_operand.hbm [shape: bf16[128,128], index: 1, kind: input, shape index: {}]
  %s2 = inlined_call_operand.vmem [shape: f32[1,128], index: 2, kind: input, shape index: {}]
  %s3 = inlined_call_operand.hbm [shape: bf16[128,128], index: 3, kind: input, shape index: {}]
  %s4 = inlined_call_operand.vmem [shape: f32[1,128], index: 4, kind: input, shape index: {}]
  %s5 = inlined_call_operand.hbm [shape: bf16[128,128], index: 5, kind: input, shape index: {}]
  %s6 = inlined_call_operand.vmem [shape: f32[1,128], index: 6, kind: input, shape index: {}]
  %s7 = inlined_call_operand.vmem [shape: f32[1,128], index: 7, kind: input, shape index: {}]
  %s8 = inlined_call_operand.<no memory space> [shape: f32[1,1], index: 8, kind: input, shape index: {}]
  %s9 = inlined_call_operand.vmem [shape: f32[32,1], index: 9, kind: output, shape index: {}]
  %s10 = sld [smem:[#allocation0]]
  $region85: #{tpu_custom_call.1} parent=0
    _
  %s12 = ssub.s32 1, %s10
  %s13 = scalar_select 0, %s12, %s10
  %v14 = vstv %s8
  %15 = vst [vmem:[#allocation2] sm:$0x1] %v14
  $region1: #{tpu_custom_call.1} parent=0
    #allocation3 [shape = 'u8[8192]{0}', space=vmem, size = 0x2000, scoped, tag = 'input window, operand 0']
    #allocation4 [shape = 's32[2]{0}', space=sflag, size = 0x8, scoped, tag = 'scoped memory for tpu_custom_call.1']
    #allocation5 [shape = 'u8[32768]{0}', space=vmem, size = 0x8000, scoped, tag = 'input window, operand 1, single buffered']
    #allocation6 [shape = 's32[1]{0}', space=sflag, size = 0x4, scoped, tag = 'scoped memory for tpu_custom_call.1']
    #allocation7 [shape = 'u8[32768]{0}', space=vmem, size = 0x8000, scoped, tag = 'input window, operand 3, single buffered']
    #allocation8 [shape = 'u8[32768]{0}', space=vmem, size = 0x8000, scoped, tag = 'input window, operand 5, single buffered']
    #allocation9 [shape = 's32[1]{0}', space=sflag, size = 0x4, scoped, tag = 'scoped memory for tpu_custom_call.1']
    %16 = vsyncpa [#allocation4], 0
    %s17 = scalar_lea.sflag [#allocation4], 1
    %18 = vsyncpa %s17, 0
    %19 = vsyncpa [#allocation6], 0
    %20 = vsyncpa [#allocation9], 0
    loop: start=0, step=1, limit=4
    $region2: #{tpu_custom_call.1} parent=1 // loop_pre_header
      _
    $region3: #{tpu_custom_call.1} parent=1 // loop_header
      %s22 = sphi 0, %s26
      %p23 = scmp.ge.s32.totalorder %s22, 4
      %s32 = sphi 0, %s34
      %s35 = sphi 0, %s32
      %s36 = sphi 0, %s35
      %s52 = sphi 0, %s36
      %s56 = sphi 0, %s56
      %s58 = sphi 0, %s56
      %s59 = sphi 0, %s58
      %s73 = sphi 0, %s59
      %s77 = sphi 0, %s77
      %s79 = sphi 0, %s77
      %s80 = sphi 0, %s79
      %s94 = sphi 0, %s80
      %s98 = sphi 0, %s98
      %s100 = sphi 0, %s98
      %s101 = sphi 0, %s100
      %s115 = sphi 0, %s101
      %s119 = sphi 0, %s119
      %s121 = sphi 0, %s119
      %s122 = sphi 0, %s121
      %s136 = sphi 0, %s122
      %s140 = sphi 0, %s140
      %s142 = sphi 0, %s140
      %s143 = sphi 0, %s142
      %s157 = sphi 0, %s143
      %s161 = sphi 0, %s161
      %s163 = sphi 0, %s161
      %s164 = sphi 0, %s163
      %s178 = sphi 0, %s164
      %s182 = sphi 0, %s182
      %s184 = sphi 0, %s182
      %s185 = sphi 0, %s184
      %s199 = sphi 0, %s185
      %s203 = sphi 0, %s203
      %s205 = sphi 0, %s203
      %s206 = sphi 0, %s205
      %s220 = sphi 0, %s206
      %s226 = sphi 0, %s228
      %s229 = sphi 0, %s226
      %s230 = sphi 0, %s229
      %s246 = sphi 0, %s230
    $region4: #{tpu_custom_call.1} parent=1 // loop_header_branch
      %25 = sbr.rel (%p23) target = $region8
    $region5: #{tpu_custom_call.1} parent=1 // loop_body
      %s27 = ssub.s32 %s22, 1
      %s28 = ssub.s32 %s22, 2
      %s29 = sadd.s32 %s22, 1
      %s30 = ssub.s32 %s22, %s29
      %p31 = scmp.eq.s32.totalorder %s30, 0
      %s33 = sadd.s32 %s32, 1
      %s34 = scalar_select %p31, %s32, %s33
      %p37 = pneg %p31
      %p38 = scmp.eq.s32.totalorder %s22, 1
      %p39 = por %p37, %p38
      %p40 = scmp.ne.s32.totalorder %s32, %s35
      %p41 = scmp.eq.s32.totalorder %s22, 0
      %p42 = por %p40, %p41
      %p43 = scmp.ne.s32.totalorder %s32, %s35
      %p44 = scmp.eq.s32.totalorder %s27, 1
      %p45 = por %p43, %p44
      %p46 = scmp.ne.s32.totalorder %s35, %s36
      %p47 = scmp.eq.s32.totalorder %s27, 0
      %p48 = por %p46, %p47
      %p49 = scmp.ne.s32.totalorder %s35, %s36
      %p50 = scmp.eq.s32.totalorder %s28, 1
      %p51 = por %p49, %p50
      %p53 = scmp.ne.s32.totalorder %s36, %s52
      %p54 = scmp.eq.s32.totalorder %s28, 0
      %p55 = por %p53, %p54
      %s57 = sadd.s32 %s56, 1
      %p60 = scmp.eq.s32.totalorder %s22, 1
      %p61 = scmp.ne.s32.totalorder %s56, %s58
      %p62 = scmp.eq.s32.totalorder %s22, 0
      %p63 = por %p61, %p62
      %p64 = scmp.ne.s32.totalorder %s56, %s58
      %p65 = scmp.eq.s32.totalorder %s27, 1
      %p66 = por %p64, %p65
      %p67 = scmp.ne.s32.totalorder %s58, %s59
      %p68 = scmp.eq.s32.totalorder %s27, 0
      %p69 = por %p67, %p68
      %p70 = scmp.ne.s32.totalorder %s58, %s59
      %p71 = scmp.eq.s32.totalorder %s28, 1
      %p72 = por %p70, %p71
      %p74 = scmp.ne.s32.totalorder %s59, %s73
      %p75 = scmp.eq.s32.totalorder %s28, 0
      %p76 = por %p74, %p75
      %s78 = sadd.s32 %s77, 1
      %p81 = scmp.eq.s32.totalorder %s22, 1
      %p82 = scmp.ne.s32.totalorder %s77, %s79
      %p83 = scmp.eq.s32.totalorder %s22, 0
      %p84 = por %p82, %p83
      %p85 = scmp.ne.s32.totalorder %s77, %s79
      %p86 = scmp.eq.s32.totalorder %s27, 1
      %p87 = por %p85, %p86
      %p88 = scmp.ne.s32.totalorder %s79, %s80
      %p89 = scmp.eq.s32.totalorder %s27, 0
      %p90 = por %p88, %p89
      %p91 = scmp.ne.s32.totalorder %s79, %s80
      %p92 = scmp.eq.s32.totalorder %s28, 1
      %p93 = por %p91, %p92
      %p95 = scmp.ne.s32.totalorder %s80, %s94
      %p96 = scmp.eq.s32.totalorder %s28, 0
      %p97 = por %p95, %p96
      %s99 = sadd.s32 %s98, 1
      %p102 = scmp.eq.s32.totalorder %s22, 1
      %p103 = scmp.ne.s32.totalorder %s98, %s100
      %p104 = scmp.eq.s32.totalorder %s22, 0
      %p105 = por %p103, %p104
      %p106 = scmp.ne.s32.totalorder %s98, %s100
      %p107 = scmp.eq.s32.totalorder %s27, 1
      %p108 = por %p106, %p107
      %p109 = scmp.ne.s32.totalorder %s100, %s101
      %p110 = scmp.eq.s32.totalorder %s27, 0
      %p111 = por %p109, %p110
      %p112 = scmp.ne.s32.totalorder %s100, %s101
      %p113 = scmp.eq.s32.totalorder %s28, 1
      %p114 = por %p112, %p113
      %p116 = scmp.ne.s32.totalorder %s101, %s115
      %p117 = scmp.eq.s32.totalorder %s28, 0
      %p118 = por %p116, %p117
      %s120 = sadd.s32 %s119, 1
      %p123 = scmp.eq.s32.totalorder %s22, 1
      %p124 = scmp.ne.s32.totalorder %s119, %s121
      %p125 = scmp.eq.s32.totalorder %s22, 0
      %p126 = por %p124, %p125
      %p127 = scmp.ne.s32.totalorder %s119, %s121
      %p128 = scmp.eq.s32.totalorder %s27, 1
      %p129 = por %p127, %p128
      %p130 = scmp.ne.s32.totalorder %s121, %s122
      %p131 = scmp.eq.s32.totalorder %s27, 0
      %p132 = por %p130, %p131
      %p133 = scmp.ne.s32.totalorder %s121, %s122
      %p134 = scmp.eq.s32.totalorder %s28, 1
      %p135 = por %p133, %p134
      %p137 = scmp.ne.s32.totalorder %s122, %s136
      %p138 = scmp.eq.s32.totalorder %s28, 0
      %p139 = por %p137, %p138
      %s141 = sadd.s32 %s140, 1
      %p144 = scmp.eq.s32.totalorder %s22, 1
      %p145 = scmp.ne.s32.totalorder %s140, %s142
      %p146 = scmp.eq.s32.totalorder %s22, 0
      %p147 = por %p145, %p146
      %p148 = scmp.ne.s32.totalorder %s140, %s142
      %p149 = scmp.eq.s32.totalorder %s27, 1
      %p150 = por %p148, %p149
      %p151 = scmp.ne.s32.totalorder %s142, %s143
      %p152 = scmp.eq.s32.totalorder %s27, 0
      %p153 = por %p151, %p152
      %p154 = scmp.ne.s32.totalorder %s142, %s143
      %p155 = scmp.eq.s32.totalorder %s28, 1
      %p156 = por %p154, %p155
      %p158 = scmp.ne.s32.totalorder %s143, %s157
      %p159 = scmp.eq.s32.totalorder %s28, 0
      %p160 = por %p158, %p159
      %s162 = sadd.s32 %s161, 1
      %p165 = scmp.eq.s32.totalorder %s22, 1
      %p166 = scmp.ne.s32.totalorder %s161, %s163
      %p167 = scmp.eq.s32.totalorder %s22, 0
      %p168 = por %p166, %p167
      %p169 = scmp.ne.s32.totalorder %s161, %s163
      %p170 = scmp.eq.s32.totalorder %s27, 1
      %p171 = por %p169, %p170
      %p172 = scmp.ne.s32.totalorder %s163, %s164
      %p173 = scmp.eq.s32.totalorder %s27, 0
      %p174 = por %p172, %p173
      %p175 = scmp.ne.s32.totalorder %s163, %s164
      %p176 = scmp.eq.s32.totalorder %s28, 1
      %p177 = por %p175, %p176
      %p179 = scmp.ne.s32.totalorder %s164, %s178
      %p180 = scmp.eq.s32.totalorder %s28, 0
      %p181 = por %p179, %p180
      %s183 = sadd.s32 %s182, 1
      %p186 = scmp.eq.s32.totalorder %s22, 1
      %p187 = scmp.ne.s32.totalorder %s182, %s184
      %p188 = scmp.eq.s32.totalorder %s22, 0
      %p189 = por %p187, %p188
      %p190 = scmp.ne.s32.totalorder %s182, %s184
      %p191 = scmp.eq.s32.totalorder %s27, 1
      %p192 = por %p190, %p191
      %p193 = scmp.ne.s32.totalorder %s184, %s185
      %p194 = scmp.eq.s32.totalorder %s27, 0
      %p195 = por %p193, %p194
      %p196 = scmp.ne.s32.totalorder %s184, %s185
      %p197 = scmp.eq.s32.totalorder %s28, 1
      %p198 = por %p196, %p197
      %p200 = scmp.ne.s32.totalorder %s185, %s199
      %p201 = scmp.eq.s32.totalorder %s28, 0
      %p202 = por %p200, %p201
      %s204 = sadd.s32 %s203, 1
      %p207 = scmp.eq.s32.totalorder %s22, 1
      %p208 = scmp.ne.s32.totalorder %s203, %s205
      %p209 = scmp.eq.s32.totalorder %s22, 0
      %p210 = por %p208, %p209
      %p211 = scmp.ne.s32.totalorder %s203, %s205
      %p212 = scmp.eq.s32.totalorder %s27, 1
      %p213 = por %p211, %p212
      %p214 = scmp.ne.s32.totalorder %s205, %s206
      %p215 = scmp.eq.s32.totalorder %s27, 0
      %p216 = por %p214, %p215
      %p217 = scmp.ne.s32.totalorder %s205, %s206
      %p218 = scmp.eq.s32.totalorder %s28, 1
      %p219 = por %p217, %p218
      %p221 = scmp.ne.s32.totalorder %s206, %s220
      %p222 = scmp.eq.s32.totalorder %s28, 0
      %p223 = por %p221, %p222
      %s224 = ssub.s32 %s22, %s29
      %p225 = scmp.eq.s32.totalorder %s224, 0
      %s227 = sadd.s32 %s226, 1
      %s228 = scalar_select %p225, %s226, %s227
      %p231 = pneg %p225
      %p232 = scmp.eq.s32.totalorder %s22, 1
      %p233 = por %p231, %p232
      %p234 = scmp.ne.s32.totalorder %s226, %s229
      %p235 = scmp.eq.s32.totalorder %s22, 0
      %p236 = por %p234, %p235
      %p237 = scmp.ne.s32.totalorder %s226, %s229
      %p238 = scmp.eq.s32.totalorder %s27, 1
      %p239 = por %p237, %p238
      %p240 = scmp.ne.s32.totalorder %s229, %s230
      %p241 = scmp.eq.s32.totalorder %s27, 0
      %p242 = por %p240, %p241
      %p243 = scmp.ne.s32.totalorder %s229, %s230
      %p244 = scmp.eq.s32.totalorder %s28, 1
      %p245 = por %p243, %p244
      %p247 = scmp.ne.s32.totalorder %s230, %s246
      %p248 = scmp.eq.s32.totalorder %s28, 0
      %p249 = por %p247, %p248
      %p250 = scmp.le.s32.totalorder 1, %s22
      %p251 = scmp.lt.s32.totalorder %s22, 3
      %p252 = pnand %p250, %p251
      %p253 = pneg %p252
      // Predicated region
      $region9: #{tpu_custom_call.1} parent=5 // pred_check
        _
      $region10: #{tpu_custom_call.1} parent=5 // pred_check_branch
        %255 = sbr.rel (%p252) target = $region12
      $region11: #{tpu_custom_call.1} parent=5 // pred_region
        %s256 = ssub.s32 %s22, 1
        // Predicated region
        $region13: #{tpu_custom_call.1} parent=11 // pred_check
          %p257 = pneg %p69
        $region14: #{tpu_custom_call.1} parent=11 // pred_check_branch
          %259 = sbr.rel (%p257) target = $region16
        $region15: #{tpu_custom_call.1} parent=11 // pred_region
          %261 = vsyncadd [#allocation6], 0
          %s262 = sshll.u32 %s1, 4
          %s263 = int_to_ptr.hbm [resolvable:$true] %s262
          %s264 = sshll.u32 [#allocation5], 4
          %s265 = int_to_ptr.vmem [resolvable:$true] %s264
          %270 = dma.hbm_to_vmem [thread:$0]  %s263, 1024, %s265, [#allocation6], 64, 64, 4
        $region16: #{tpu_custom_call.1} parent=11 // pred_fallthru
          _
        // Predicated region
        $region17: #{tpu_custom_call.1} parent=11 // pred_check
          %p271 = pneg %p90
        $region18: #{tpu_custom_call.1} parent=11 // pred_check_branch
          %273 = sbr.rel (%p271) target = $region20
        $region19: #{tpu_custom_call.1} parent=11 // pred_region
          _
        $region20: #{tpu_custom_call.1} parent=11 // pred_fallthru
          _
        // Predicated region
        $region21: #{tpu_custom_call.1} parent=11 // pred_check
          %p274 = pneg %p111
        $region22: #{tpu_custom_call.1} parent=11 // pred_check_branch
          %276 = sbr.rel (%p274) target = $region24
        $region23: #{tpu_custom_call.1} parent=11 // pred_region
          %278 = vsyncadd [#allocation6], 0
          %s279 = sshll.u32 %s3, 4
          %s280 = int_to_ptr.hbm [resolvable:$true] %s279
          %s281 = sshll.u32 [#allocation7], 4
          %s282 = int_to_ptr.vmem [resolvable:$true] %s281
          %287 = dma.hbm_to_vmem [thread:$0]  %s280, 1024, %s282, [#allocation6], 64, 64, 4
        $region24: #{tpu_custom_call.1} parent=11 // pred_fallthru
          _
        // Predicated region
        $region25: #{tpu_custom_call.1} parent=11 // pred_check
          %p288 = pneg %p132
        $region26: #{tpu_custom_call.1} parent=11 // pred_check_branch
          %290 = sbr.rel (%p288) target = $region28
        $region27: #{tpu_custom_call.1} parent=11 // pred_region
          _
        $region28: #{tpu_custom_call.1} parent=11 // pred_fallthru
          _
        // Predicated region
        $region29: #{tpu_custom_call.1} parent=11 // pred_check
          %p291 = pneg %p153
        $region30: #{tpu_custom_call.1} parent=11 // pred_check_branch
          %293 = sbr.rel (%p291) target = $region32
        $region31: #{tpu_custom_call.1} parent=11 // pred_region
          %295 = vsyncadd [#allocation9], 0
          %s296 = sshll.u32 %s5, 4
          %s297 = int_to_ptr.hbm [resolvable:$true] %s296
          %s298 = sshll.u32 [#allocation8], 4
          %s299 = int_to_ptr.vmem [resolvable:$true] %s298
          %304 = dma.hbm_to_vmem [thread:$0]  %s297, 1024, %s299, [#allocation9], 64, 64, 4
        $region32: #{tpu_custom_call.1} parent=11 // pred_fallthru
          _
        // Predicated region
        $region33: #{tpu_custom_call.1} parent=11 // pred_check
          %p305 = pneg %p174
        $region34: #{tpu_custom_call.1} parent=11 // pred_check_branch
          %307 = sbr.rel (%p305) target = $region36
        $region35: #{tpu_custom_call.1} parent=11 // pred_region
          _
        $region36: #{tpu_custom_call.1} parent=11 // pred_fallthru
          _
        // Predicated region
        $region37: #{tpu_custom_call.1} parent=11 // pred_check
          %p308 = pneg %p195
        $region38: #{tpu_custom_call.1} parent=11 // pred_check_branch
          %310 = sbr.rel (%p308) target = $region40
        $region39: #{tpu_custom_call.1} parent=11 // pred_region
          _
        $region40: #{tpu_custom_call.1} parent=11 // pred_fallthru
          _
        // Predicated region
        $region41: #{tpu_custom_call.1} parent=11 // pred_check
          %p311 = pneg %p216
        $region42: #{tpu_custom_call.1} parent=11 // pred_check_branch
          %313 = sbr.rel (%p311) target = $region44
        $region43: #{tpu_custom_call.1} parent=11 // pred_region
          _
        $region44: #{tpu_custom_call.1} parent=11 // pred_fallthru
          _
      $region12: #{tpu_custom_call.1} parent=5 // pred_fallthru
        _
      %p314 = scmp.lt.s32.totalorder %s22, 2
      // Predicated region
      $region45: #{tpu_custom_call.1} parent=5 // pred_check
        %p315 = pneg %p314
      $region46: #{tpu_custom_call.1} parent=5 // pred_check_branch
        %317 = sbr.rel (%p315) target = $region48
      $region47: #{tpu_custom_call.1} parent=5 // pred_region
        // Predicated region
        $region49: #{tpu_custom_call.1} parent=47 // pred_check
          %p318 = pneg %p42
        $region50: #{tpu_custom_call.1} parent=47 // pred_check_branch
          %320 = sbr.rel (%p318) target = $region52
        $region51: #{tpu_custom_call.1} parent=47 // pred_region
          %s321 = sand.u32 %s32, 1
          %s322 = scalar_lea.sflag [#allocation4], %s321
          %s323 = sand.u32 %s32, 1
          %s324 = smul.addr %s323, 8
          %s325 = scalar_lea.vmem [#allocation3], %s324
          %s326 = smul.u32 2, %s22
          %328 = vsyncadd %s322, 0
          %s329 = smul.addr %s326, 4
          %s330 = scalar_lea.hbm %s0, %s329
          %s331 = sshll.u32 %s330, 4
          %s332 = int_to_ptr.hbm [resolvable:$true] %s331
          %s333 = sshll.u32 %s325, 4
          %s334 = int_to_ptr.vmem [resolvable:$true] %s333
          %339 = dma.hbm_to_vmem [thread:$0]  %s332, 128, %s334, %s322, 64, 64, 4
        $region52: #{tpu_custom_call.1} parent=47 // pred_fallthru
          _
      $region48: #{tpu_custom_call.1} parent=5 // pred_fallthru
        _
      %p340 = scmp.le.s32.totalorder 1, %s22
      %p341 = scmp.lt.s32.totalorder %s22, 3
      %p342 = pnand %p340, %p341
      %p343 = pneg %p342
      // Predicated region
      $region53: #{tpu_custom_call.1} parent=5 // pred_check
        _
      $region54: #{tpu_custom_call.1} parent=5 // pred_check_branch
        %345 = sbr.rel (%p342) target = $region56
      $region55: #{tpu_custom_call.1} parent=5 // pred_region
        %s346 = ssub.s32 %s22, 1
        %s347 = sand.u32 %s35, 1
        %s348 = scalar_lea.sflag [#allocation4], %s347
        %s349 = sand.u32 %s35, 1
        %s350 = smul.addr %s349, 8
        %s351 = scalar_lea.vmem [#allocation3], %s350
        // Predicated region
        $region57: #{tpu_custom_call.1} parent=55 // pred_check
          %p352 = pneg %p48
        $region58: #{tpu_custom_call.1} parent=55 // pred_check_branch
          %354 = sbr.rel (%p352) target = $region60
        $region59: #{tpu_custom_call.1} parent=55 // pred_region
          %356 = dma.done %s348, 128
        $region60: #{tpu_custom_call.1} parent=55 // pred_fallthru
          _
        // Predicated region
        $region61: #{tpu_custom_call.1} parent=55 // pred_check
          %p357 = pneg %p69
        $region62: #{tpu_custom_call.1} parent=55 // pred_check_branch
          %359 = sbr.rel (%p357) target = $region64
        $region63: #{tpu_custom_call.1} parent=55 // pred_region
          %361 = dma.done [#allocation6], 1024
        $region64: #{tpu_custom_call.1} parent=55 // pred_fallthru
          _
        // Predicated region
        $region65: #{tpu_custom_call.1} parent=55 // pred_check
          %p362 = pneg %p111
        $region66: #{tpu_custom_call.1} parent=55 // pred_check_branch
          %364 = sbr.rel (%p362) target = $region68
        $region67: #{tpu_custom_call.1} parent=55 // pred_region
          %366 = dma.done [#allocation6], 1024
        $region68: #{tpu_custom_call.1} parent=55 // pred_fallthru
          _
        // Predicated region
        $region69: #{tpu_custom_call.1} parent=55 // pred_check
          %p367 = pneg %p153
        $region70: #{tpu_custom_call.1} parent=55 // pred_check_branch
          %369 = sbr.rel (%p367) target = $region72
        $region71: #{tpu_custom_call.1} parent=55 // pred_region
          %371 = dma.done [#allocation9], 1024
        $region72: #{tpu_custom_call.1} parent=55 // pred_fallthru
          _
        %s372 = sand.u32 %s35, 1
        %s373 = scalar_lea.sflag [#allocation4], %s372
        %s374 = sand.u32 %s35, 1
        %s375 = smul.addr %s374, 8
        %s376 = scalar_lea.vmem [#allocation3], %s375
        %p377 = pneg %p48
        %p378 = pneg %p45
        %p379 = pneg %p69
        %p380 = pneg %p66
        %p381 = pneg %p90
        %p382 = pneg %p87
        %p383 = pneg %p111
        %p384 = pneg %p108
        %p385 = pneg %p132
        %p386 = pneg %p129
        %p387 = pneg %p153
        %p388 = pneg %p150
        %p389 = pneg %p174
        %p390 = pneg %p171
        %p391 = pneg %p195
        %p392 = pneg %p192
        %p393 = pneg %p216
        %p394 = pneg %p213
        %p395 = pneg %p242
        %p396 = pneg %p239
        %s397 = smul.u32 2, %s27
        %p398 = scmp.lt.s32.totalorder %s397, 3
        %s399 = scalar_select %p398, %s397, 3
        %s400 = smul.addr %s399, 8
        %s401 = scalar_lea.vmem %s9, %s400
        %s402 = smul.u32 2, %s27
        %s403 = smul.u32 2, %s27
        %p404 = scmp.lt.s32.totalorder %s403, 3
        %s405 = scalar_select %p404, %s403, 3
        %s406 = smul.addr %s405, 8
        %s407 = scalar_lea.vmem %s9, %s406
        %s408 = smul.u32 2, %s27
        %v409 = vld [vmem:[%s351] sm:$0xf]
        %v410 = vld [vmem:[%s351 + $0x4] sm:$0xf]
        %v411 = vld [vmem:[#allocation5] sm:$0xf]
        %v412 = vld [vmem:[#allocation5 + $0x4] sm:$0xf]
        %v413 = vld [vmem:[#allocation5 + $0x8] sm:$0xf]
        %v414 = vld [vmem:[#allocation5 + $0xc] sm:$0xf]
        %v415 = vld [vmem:[#allocation5 + $0x10] sm:$0xf]
        %v416 = vld [vmem:[#allocation5 + $0x14] sm:$0xf]
        %v417 = vld [vmem:[#allocation5 + $0x18] sm:$0xf]
        %v418 = vld [vmem:[#allocation5 + $0x1c] sm:$0xf]
        %v419 = vld [vmem:[#allocation5 + $0x20] sm:$0xf]
        %v420 = vld [vmem:[#allocation5 + $0x24] sm:$0xf]
        %v421 = vld [vmem:[#allocation5 + $0x28] sm:$0xf]
        %v422 = vld [vmem:[#allocation5 + $0x2c] sm:$0xf]
        %v423 = vld [vmem:[#allocation5 + $0x30] sm:$0xf]
        %v424 = vld [vmem:[#allocation5 + $0x34] sm:$0xf]
        %v425 = vld [vmem:[#allocation5 + $0x38] sm:$0xf]
        %v426 = vld [vmem:[#allocation5 + $0x3c] sm:$0xf]
        %v427 = vld [vmem:[%s2] sm:$0x1]
        %v429 = vperm.slane %v427, 0
        %v433 = vunpack.c.l.b16 %v409
        %v434 = vunpack.c.l.b16 %v410
        %v435 = vpack.c.b16 %v434, %v433
        %v453 = vunpack.c.l.b16 %v411
        %v454 = vunpack.c.l.b16 %v412
        %v455 = vunpack.c.l.b16 %v413
        %v456 = vunpack.c.l.b16 %v414
        %v457 = vunpack.c.l.b16 %v415
        %v458 = vunpack.c.l.b16 %v416
        %v459 = vunpack.c.l.b16 %v417
        %v460 = vunpack.c.l.b16 %v418
        %v461 = vunpack.c.l.b16 %v419
        %v462 = vunpack.c.l.b16 %v420
        %v463 = vunpack.c.l.b16 %v421
        %v464 = vunpack.c.l.b16 %v422
        %v465 = vunpack.c.l.b16 %v423
        %v466 = vunpack.c.l.b16 %v424
        %v467 = vunpack.c.l.b16 %v425
        %v468 = vunpack.c.l.b16 %v426
        %v469 = vpack.c.b16 %v454, %v453
        %v470 = vpack.c.b16 %v456, %v455
        %v471 = vpack.c.b16 %v458, %v457
        %v472 = vpack.c.b16 %v460, %v459
        %v473 = vpack.c.b16 %v462, %v461
        %v474 = vpack.c.b16 %v464, %v463
        %v475 = vpack.c.b16 %v466, %v465
        %v476 = vpack.c.b16 %v468, %v467
        %485 = vmatpush.bf16.msra.mxu0 %v476
        %486 = vmatpush.bf16.msra.mxu0 %v475
        %487 = vmatpush.bf16.msra.mxu0 %v474
        %488 = vmatpush.bf16.msra.mxu0 %v473
        %489 = vmatpush.bf16.msra.mxu0 %v472
        %490 = vmatpush.bf16.msra.mxu0 %v471
        %491 = vmatpush.bf16.msra.mxu0 %v470
        %492 = vmatpush.bf16.msra.mxu0 %v469
        %493 = vmatmul.bf16.gmra.mxu0 %v435
        %v494 = vpop.f32.mrf.mxu0
        %v495 = vadd.f32 %v429, %v494
        %v496 = vpop.f32.mrf.mxu0
        %v497 = vadd.f32 %v429, %v496
        %498 = vdwg.mxu0
        %vm499 = vcmp.gt.f32.partialorder %v495, 0.0
        %vm500 = vcmp.gt.f32.partialorder %v497, 0.0
        %v501 = vmul.f32 %v495, 0.01
        %v502 = vmul.f32 %v497, 0.01
        %v503 = vsel %vm499, %v495, %v501
        %v504 = vsel %vm500, %v497, %v502
        %v505 = vpack.c.bf16 %v504, %v503
        %v506 = vld [vmem:[#allocation7] sm:$0xf]
        %v507 = vld [vmem:[#allocation7 + $0x4] sm:$0xf]
        %v508 = vld [vmem:[#allocation7 + $0x8] sm:$0xf]
        %v509 = vld [vmem:[#allocation7 + $0xc] sm:$0xf]
        %v510 = vld [vmem:[#allocation7 + $0x10] sm:$0xf]
        %v511 = vld [vmem:[#allocation7 + $0x14] sm:$0xf]
        %v512 = vld [vmem:[#allocation7 + $0x18] sm:$0xf]
        %v513 = vld [vmem:[#allocation7 + $0x1c] sm:$0xf]
        %v514 = vld [vmem:[#allocation7 + $0x20] sm:$0xf]
        %v515 = vld [vmem:[#allocation7 + $0x24] sm:$0xf]
        %v516 = vld [vmem:[#allocation7 + $0x28] sm:$0xf]
        %v517 = vld [vmem:[#allocation7 + $0x2c] sm:$0xf]
        %v518 = vld [vmem:[#allocation7 + $0x30] sm:$0xf]
        %v519 = vld [vmem:[#allocation7 + $0x34] sm:$0xf]
        %v520 = vld [vmem:[#allocation7 + $0x38] sm:$0xf]
        %v521 = vld [vmem:[#allocation7 + $0x3c] sm:$0xf]
        %v522 = vld [vmem:[%s4] sm:$0x1]
        %v524 = vperm.slane %v522, 0
        %v542 = vunpack.c.l.b16 %v506
        %v543 = vunpack.c.l.b16 %v507
        %v544 = vunpack.c.l.b16 %v508
        %v545 = vunpack.c.l.b16 %v509
        %v546 = vunpack.c.l.b16 %v510
        %v547 = vunpack.c.l.b16 %v511
        %v548 = vunpack.c.l.b16 %v512
        %v549 = vunpack.c.l.b16 %v513
        %v550 = vunpack.c.l.b16 %v514
        %v551 = vunpack.c.l.b16 %v515
        %v552 = vunpack.c.l.b16 %v516
        %v553 = vunpack.c.l.b16 %v517
        %v554 = vunpack.c.l.b16 %v518
        %v555 = vunpack.c.l.b16 %v519
        %v556 = vunpack.c.l.b16 %v520
        %v557 = vunpack.c.l.b16 %v521
        %v558 = vpack.c.b16 %v543, %v542
        %v559 = vpack.c.b16 %v545, %v544
        %v560 = vpack.c.b16 %v547, %v546
        %v561 = vpack.c.b16 %v549, %v548
        %v562 = vpack.c.b16 %v551, %v550
        %v563 = vpack.c.b16 %v553, %v552
        %v564 = vpack.c.b16 %v555, %v554
        %v565 = vpack.c.b16 %v557, %v556
        %574 = vmatpush.bf16.msra.mxu0 %v565
        %575 = vmatpush.bf16.msra.mxu0 %v564
        %576 = vmatpush.bf16.msra.mxu0 %v563
        %577 = vmatpush.bf16.msra.mxu0 %v562
        %578 = vmatpush.bf16.msra.mxu0 %v561
        %579 = vmatpush.bf16.msra.mxu0 %v560
        %580 = vmatpush.bf16.msra.mxu0 %v559
        %581 = vmatpush.bf16.msra.mxu0 %v558
        %582 = vmatmul.bf16.gmra.mxu0 %v505
        %v583 = vpop.f32.mrf.mxu0
        %v584 = vadd.f32 %v524, %v583
        %v585 = vpop.f32.mrf.mxu0
        %v586 = vadd.f32 %v524, %v585
        %587 = vdwg.mxu0
        %vm588 = vcmp.gt.f32.partialorder %v584, 0.0
        %vm589 = vcmp.gt.f32.partialorder %v586, 0.0
        %v590 = vmul.f32 %v584, 0.01
        %v591 = vmul.f32 %v586, 0.01
        %v592 = vsel %vm588, %v584, %v590
        %v593 = vsel %vm589, %v586, %v591
        %v594 = vpack.c.bf16 %v593, %v592
        %v595 = vld [vmem:[#allocation8] sm:$0xf]
        %v596 = vld [vmem:[#allocation8 + $0x4] sm:$0xf]
        %v597 = vld [vmem:[#allocation8 + $0x8] sm:$0xf]
        %v598 = vld [vmem:[#allocation8 + $0xc] sm:$0xf]
        %v599 = vld [vmem:[#allocation8 + $0x10] sm:$0xf]
        %v600 = vld [vmem:[#allocation8 + $0x14] sm:$0xf]
        %v601 = vld [vmem:[#allocation8 + $0x18] sm:$0xf]
        %v602 = vld [vmem:[#allocation8 + $0x1c] sm:$0xf]
        %v603 = vld [vmem:[#allocation8 + $0x20] sm:$0xf]
        %v604 = vld [vmem:[#allocation8 + $0x24] sm:$0xf]
        %v605 = vld [vmem:[#allocation8 + $0x28] sm:$0xf]
        %v606 = vld [vmem:[#allocation8 + $0x2c] sm:$0xf]
        %v607 = vld [vmem:[#allocation8 + $0x30] sm:$0xf]
        %v608 = vld [vmem:[#allocation8 + $0x34] sm:$0xf]
        %v609 = vld [vmem:[#allocation8 + $0x38] sm:$0xf]
        %v610 = vld [vmem:[#allocation8 + $0x3c] sm:$0xf]
        %v611 = vld [vmem:[%s6] sm:$0x1]
        %v613 = vperm.slane %v611, 0
        %v631 = vunpack.c.l.b16 %v595
        %v632 = vunpack.c.l.b16 %v596
        %v633 = vunpack.c.l.b16 %v597
        %v634 = vunpack.c.l.b16 %v598
        %v635 = vunpack.c.l.b16 %v599
        %v636 = vunpack.c.l.b16 %v600
        %v637 = vunpack.c.l.b16 %v601
        %v638 = vunpack.c.l.b16 %v602
        %v639 = vunpack.c.l.b16 %v603
        %v640 = vunpack.c.l.b16 %v604
        %v641 = vunpack.c.l.b16 %v605
        %v642 = vunpack.c.l.b16 %v606
        %v643 = vunpack.c.l.b16 %v607
        %v644 = vunpack.c.l.b16 %v608
        %v645 = vunpack.c.l.b16 %v609
        %v646 = vunpack.c.l.b16 %v610
        %v647 = vpack.c.b16 %v632, %v631
        %v648 = vpack.c.b16 %v634, %v633
        %v649 = vpack.c.b16 %v636, %v635
        %v650 = vpack.c.b16 %v638, %v637
        %v651 = vpack.c.b16 %v640, %v639
        %v652 = vpack.c.b16 %v642, %v641
        %v653 = vpack.c.b16 %v644, %v643
        %v654 = vpack.c.b16 %v646, %v645
        %663 = vmatpush.bf16.msra.mxu0 %v654
        %664 = vmatpush.bf16.msra.mxu0 %v653
        %665 = vmatpush.bf16.msra.mxu0 %v652
        %666 = vmatpush.bf16.msra.mxu0 %v651
        %667 = vmatpush.bf16.msra.mxu0 %v650
        %668 = vmatpush.bf16.msra.mxu0 %v649
        %669 = vmatpush.bf16.msra.mxu0 %v648
        %670 = vmatpush.bf16.msra.mxu0 %v647
        %671 = vmatmul.bf16.gmra.mxu0 %v594
        %v672 = vpop.f32.mrf.mxu0
        %v673 = vadd.f32 %v613, %v672
        %v674 = vpop.f32.mrf.mxu0
        %v675 = vadd.f32 %v613, %v674
        %676 = vdwg.mxu0
        %vm677 = vcmp.gt.f32.partialorder %v673, 0.0
        %vm678 = vcmp.gt.f32.partialorder %v675, 0.0
        %v679 = vmul.f32 %v673, 0.01
        %v680 = vmul.f32 %v675, 0.01
        %v681 = vsel %vm677, %v673, %v679
        %v682 = vsel %vm678, %v675, %v680
        %v683 = vld [vmem:[%s7] sm:$0x1]
        %v685 = vperm.slane %v683, 0
        %v687 = vmul.f32 %v681, %v685
        %v688 = vmul.f32 %v682, %v685
        %689 = vadd.xlane.f32.xlu0 %v687
        %v690 = vpop.xlane.xlu0 %689
        %691 = vadd.xlane.f32.xlu0 %v688
        %v692 = vpop.xlane.xlu0 %691
        %v693 = vld [vmem:[#allocation2] sm:$0x1]
        %v695 = vperm.slane %v693, 0
        %v697 = vadd.f32 %v690, %v695
        %v698 = vadd.f32 %v692, %v695
        %vm699 = vcmask 7168
        %700 = vst.msk [vmem:[%s407] sm:$0xff] %vm699, %v697
        %701 = vst.msk [vmem:[%s407 + $0x8] sm:$0xff] %vm699, %v698
        %s702 = smul.u32 2, %s27
        %p703 = scmp.lt.s32.totalorder %s702, 3
        %s704 = scalar_select %p703, %s702, 3
        %s705 = smul.addr %s704, 8
        %s706 = scalar_lea.vmem %s9, %s705
        // Predicated region
        $region73: #{tpu_custom_call.1} parent=55 // pred_check
          %p707 = pneg %p239
        $region74: #{tpu_custom_call.1} parent=55 // pred_check_branch
          %709 = sbr.rel (%p707) target = $region76
        $region75: #{tpu_custom_call.1} parent=55 // pred_region
          %s710 = smul.u32 2, %s27
        $region76: #{tpu_custom_call.1} parent=55 // pred_fallthru
          _
      $region56: #{tpu_custom_call.1} parent=5 // pred_fallthru
        _
      %p711 = scmp.le.s32.totalorder 2, %s22
      // Predicated region
      $region77: #{tpu_custom_call.1} parent=5 // pred_check
        %p712 = pneg %p711
      $region78: #{tpu_custom_call.1} parent=5 // pred_check_branch
        %714 = sbr.rel (%p712) target = $region80
      $region79: #{tpu_custom_call.1} parent=5 // pred_region
        %s715 = ssub.s32 %s22, 2
        // Predicated region
        $region81: #{tpu_custom_call.1} parent=79 // pred_check
          %p716 = pneg %p245
        $region82: #{tpu_custom_call.1} parent=79 // pred_check_branch
          %718 = sbr.rel (%p716) target = $region84
        $region83: #{tpu_custom_call.1} parent=79 // pred_region
          %s719 = smul.u32 2, %s28
          %p720 = scmp.lt.s32.totalorder %s719, 3
          %s721 = scalar_select %p720, %s719, 3
          %s722 = smul.addr %s721, 8
          %s723 = scalar_lea.vmem %s9, %s722
        $region84: #{tpu_custom_call.1} parent=79 // pred_fallthru
          _
      $region80: #{tpu_custom_call.1} parent=5 // pred_fallthru
        _
    $region6: #{tpu_custom_call.1} parent=1 // loop_footer
      %s26 = sadd.s32 1, %s22
    $region7: #{tpu_custom_call.1} parent=1 // loop_footer_branch
      %21 = sbr.rel target = $region3
    $region8: #{tpu_custom_call.1} parent=1 // loop_exit
      _
    %724 = vsyncpa [#allocation4], 1
    %s725 = scalar_lea.sflag [#allocation4], 1
    %726 = vsyncpa %s725, 1
    %727 = vsyncpa [#allocation6], 1
    %728 = vsyncpa [#allocation9], 1

// kernel: tpu_custom_call.1
$region0: #{tpu_custom_call.1}
  #allocation0 [shape = 'u32[]', space=smem, size = 0x4, offset = 0x4, fixed_abs, tag = 'smem constant byte address 0x4 - core index']
  #allocation1 [shape = 'u32[72,128]{1,0:T(1,128)}', space=vmem, size = 0x9000, scoped, tag = 'internal scratch']
  #allocation2 [shape = 'f32[1,1]{1,0:T(1,128)S(1)}', space=vmem, size = 0x200, scoped, tag = 'scoped memory for tpu_custom_call.1']
  %s0 = inlined_call_operand.hbm [shape: bf16[32,128], index: 0, kind: input, shape index: {}]
  %s1 = inlined_call_operand.hbm [shape: bf16[128,128], index: 1, kind: input, shape index: {}]
  %s2 = inlined_call_operand.vmem [shape: f32[1,128], index: 2, kind: input, shape index: {}]
  %s3 = inlined_call_operand.hbm [shape: bf16[128,128], index: 3, kind: input, shape index: {}]
  %s4 = inlined_call_operand.vmem [shape: f32[1,128], index: 4, kind: input, shape index: {}]
  %s5 = inlined_call_operand.hbm [shape: bf16[128,128], index: 5, kind: input, shape index: {}]
  %s6 = inlined_call_operand.vmem [shape: f32[1,128], index: 6, kind: input, shape index: {}]
  %s7 = inlined_call_operand.vmem [shape: f32[1,128], index: 7, kind: input, shape index: {}]
  %s8 = inlined_call_operand.<no memory space> [shape: f32[1,1], index: 8, kind: input, shape index: {}]
  %s9 = inlined_call_operand.vmem [shape: f32[32,1], index: 9, kind: output, shape index: {}]
  %s10 = sld [smem:[#allocation0]]
  $region85: #{tpu_custom_call.1} parent=0
    _
  %s12 = ssub.s32 1, %s10
  %s13 = scalar_select 0, %s12, %s10
  %v14 = vstv %s8
  %15 = vst [vmem:[#allocation2] sm:$0x1] %v14
  $region1: #{tpu_custom_call.1} parent=0
    #allocation3 [shape = 'u8[8192]{0}', space=vmem, size = 0x2000, scoped, tag = 'input window, operand 0']
    #allocation4 [shape = 's32[2]{0}', space=sflag, size = 0x8, scoped, tag = 'scoped memory for tpu_custom_call.1']
    #allocation5 [shape = 'u8[32768]{0}', space=vmem, size = 0x8000, scoped, tag = 'input window, operand 1, single buffered']
    #allocation6 [shape = 's32[1]{0}', space=sflag, size = 0x4, scoped, tag = 'scoped memory for tpu_custom_call.1']
    #allocation7 [shape = 'u8[32768]{0}', space=vmem, size = 0x8000, scoped, tag = 'input window, operand 3, single buffered']
    #allocation8 [shape = 'u8[32768]{0}', space=vmem, size = 0x8000, scoped, tag = 'input window, operand 5, single buffered']
    #allocation9 [shape = 's32[1]{0}', space=sflag, size = 0x4, scoped, tag = 'scoped memory for tpu_custom_call.1']
    %16 = vsyncpa [#allocation4], 0
    %s17 = scalar_lea.sflag [#allocation4], 1
    %18 = vsyncpa %s17, 0
    %19 = vsyncpa [#allocation6], 0
    %20 = vsyncpa [#allocation9], 0
    loop: start=0, step=1, limit=4
    $region2: #{tpu_custom_call.1} parent=1 // loop_pre_header
      _
    $region3: #{tpu_custom_call.1} parent=1 // loop_header
      %s22 = sphi 0, %s26
      %p23 = scmp.ge.s32.totalorder %s22, 4
      %s32 = sphi 0, %s34
      %s35 = sphi 0, %s32
      %s36 = sphi 0, %s35
      %s52 = sphi 0, %s36
      %s56 = sphi 0, %s56
      %s58 = sphi 0, %s56
      %s59 = sphi 0, %s58
      %s73 = sphi 0, %s59
      %s77 = sphi 0, %s77
      %s79 = sphi 0, %s77
      %s80 = sphi 0, %s79
      %s94 = sphi 0, %s80
      %s98 = sphi 0, %s98
      %s100 = sphi 0, %s98
      %s101 = sphi 0, %s100
      %s115 = sphi 0, %s101
      %s119 = sphi 0, %s119
      %s121 = sphi 0, %s119
      %s122 = sphi 0, %s121
      %s136 = sphi 0, %s122
      %s140 = sphi 0, %s140
      %s142 = sphi 0, %s140
      %s143 = sphi 0, %s142
      %s157 = sphi 0, %s143
      %s161 = sphi 0, %s161
      %s163 = sphi 0, %s161
      %s164 = sphi 0, %s163
      %s178 = sphi 0, %s164
      %s182 = sphi 0, %s182
      %s184 = sphi 0, %s182
      %s185 = sphi 0, %s184
      %s199 = sphi 0, %s185
      %s203 = sphi 0, %s203
      %s205 = sphi 0, %s203
      %s206 = sphi 0, %s205
      %s220 = sphi 0, %s206
      %s226 = sphi 0, %s228
      %s229 = sphi 0, %s226
      %s230 = sphi 0, %s229
      %s246 = sphi 0, %s230
    $region4: #{tpu_custom_call.1} parent=1 // loop_header_branch
      %25 = sbr.rel (%p23) target = $region8
    $region5: #{tpu_custom_call.1} parent=1 // loop_body
      %s27 = ssub.s32 %s22, 1
      %s28 = ssub.s32 %s22, 2
      %s29 = sadd.s32 %s22, 1
      %s30 = ssub.s32 %s22, %s29
      %p31 = scmp.eq.s32.totalorder %s30, 0
      %s33 = sadd.s32 %s32, 1
      %s34 = scalar_select %p31, %s32, %s33
      %p37 = pneg %p31
      %p38 = scmp.eq.s32.totalorder %s22, 1
      %p39 = por %p37, %p38
      %p40 = scmp.ne.s32.totalorder %s32, %s35
      %p41 = scmp.eq.s32.totalorder %s22, 0
      %p42 = por %p40, %p41
      %p43 = scmp.ne.s32.totalorder %s32, %s35
      %p44 = scmp.eq.s32.totalorder %s27, 1
      %p45 = por %p43, %p44
      %p46 = scmp.ne.s32.totalorder %s35, %s36
      %p47 = scmp.eq.s32.totalorder %s27, 0
      %p48 = por %p46, %p47
      %p49 = scmp.ne.s32.totalorder %s35, %s36
      %p50 = scmp.eq.s32.totalorder %s28, 1
      %p51 = por %p49, %p50
      %p53 = scmp.ne.s32.totalorder %s36, %s52
      %p54 = scmp.eq.s32.totalorder %s28, 0
      %p55 = por %p53, %p54
      %s57 = sadd.s32 %s56, 1
      %p60 = scmp.eq.s32.totalorder %s22, 1
      %p61 = scmp.ne.s32.totalorder %s56, %s58
      %p62 = scmp.eq.s32.totalorder %s22, 0
      %p63 = por %p61, %p62
      %p64 = scmp.ne.s32.totalorder %s56, %s58
      %p65 = scmp.eq.s32.totalorder %s27, 1
      %p66 = por %p64, %p65
      %p67 = scmp.ne.s32.totalorder %s58, %s59
      %p68 = scmp.eq.s32.totalorder %s27, 0
      %p69 = por %p67, %p68
      %p70 = scmp.ne.s32.totalorder %s58, %s59
      %p71 = scmp.eq.s32.totalorder %s28, 1
      %p72 = por %p70, %p71
      %p74 = scmp.ne.s32.totalorder %s59, %s73
      %p75 = scmp.eq.s32.totalorder %s28, 0
      %p76 = por %p74, %p75
      %s78 = sadd.s32 %s77, 1
      %p81 = scmp.eq.s32.totalorder %s22, 1
      %p82 = scmp.ne.s32.totalorder %s77, %s79
      %p83 = scmp.eq.s32.totalorder %s22, 0
      %p84 = por %p82, %p83
      %p85 = scmp.ne.s32.totalorder %s77, %s79
      %p86 = scmp.eq.s32.totalorder %s27, 1
      %p87 = por %p85, %p86
      %p88 = scmp.ne.s32.totalorder %s79, %s80
      %p89 = scmp.eq.s32.totalorder %s27, 0
      %p90 = por %p88, %p89
      %p91 = scmp.ne.s32.totalorder %s79, %s80
      %p92 = scmp.eq.s32.totalorder %s28, 1
      %p93 = por %p91, %p92
      %p95 = scmp.ne.s32.totalorder %s80, %s94
      %p96 = scmp.eq.s32.totalorder %s28, 0
      %p97 = por %p95, %p96
      %s99 = sadd.s32 %s98, 1
      %p102 = scmp.eq.s32.totalorder %s22, 1
      %p103 = scmp.ne.s32.totalorder %s98, %s100
      %p104 = scmp.eq.s32.totalorder %s22, 0
      %p105 = por %p103, %p104
      %p106 = scmp.ne.s32.totalorder %s98, %s100
      %p107 = scmp.eq.s32.totalorder %s27, 1
      %p108 = por %p106, %p107
      %p109 = scmp.ne.s32.totalorder %s100, %s101
      %p110 = scmp.eq.s32.totalorder %s27, 0
      %p111 = por %p109, %p110
      %p112 = scmp.ne.s32.totalorder %s100, %s101
      %p113 = scmp.eq.s32.totalorder %s28, 1
      %p114 = por %p112, %p113
      %p116 = scmp.ne.s32.totalorder %s101, %s115
      %p117 = scmp.eq.s32.totalorder %s28, 0
      %p118 = por %p116, %p117
      %s120 = sadd.s32 %s119, 1
      %p123 = scmp.eq.s32.totalorder %s22, 1
      %p124 = scmp.ne.s32.totalorder %s119, %s121
      %p125 = scmp.eq.s32.totalorder %s22, 0
      %p126 = por %p124, %p125
      %p127 = scmp.ne.s32.totalorder %s119, %s121
      %p128 = scmp.eq.s32.totalorder %s27, 1
      %p129 = por %p127, %p128
      %p130 = scmp.ne.s32.totalorder %s121, %s122
      %p131 = scmp.eq.s32.totalorder %s27, 0
      %p132 = por %p130, %p131
      %p133 = scmp.ne.s32.totalorder %s121, %s122
      %p134 = scmp.eq.s32.totalorder %s28, 1
      %p135 = por %p133, %p134
      %p137 = scmp.ne.s32.totalorder %s122, %s136
      %p138 = scmp.eq.s32.totalorder %s28, 0
      %p139 = por %p137, %p138
      %s141 = sadd.s32 %s140, 1
      %p144 = scmp.eq.s32.totalorder %s22, 1
      %p145 = scmp.ne.s32.totalorder %s140, %s142
      %p146 = scmp.eq.s32.totalorder %s22, 0
      %p147 = por %p145, %p146
      %p148 = scmp.ne.s32.totalorder %s140, %s142
      %p149 = scmp.eq.s32.totalorder %s27, 1
      %p150 = por %p148, %p149
      %p151 = scmp.ne.s32.totalorder %s142, %s143
      %p152 = scmp.eq.s32.totalorder %s27, 0
      %p153 = por %p151, %p152
      %p154 = scmp.ne.s32.totalorder %s142, %s143
      %p155 = scmp.eq.s32.totalorder %s28, 1
      %p156 = por %p154, %p155
      %p158 = scmp.ne.s32.totalorder %s143, %s157
      %p159 = scmp.eq.s32.totalorder %s28, 0
      %p160 = por %p158, %p159
      %s162 = sadd.s32 %s161, 1
      %p165 = scmp.eq.s32.totalorder %s22, 1
      %p166 = scmp.ne.s32.totalorder %s161, %s163
      %p167 = scmp.eq.s32.totalorder %s22, 0
      %p168 = por %p166, %p167
      %p169 = scmp.ne.s32.totalorder %s161, %s163
      %p170 = scmp.eq.s32.totalorder %s27, 1
      %p171 = por %p169, %p170
      %p172 = scmp.ne.s32.totalorder %s163, %s164
      %p173 = scmp.eq.s32.totalorder %s27, 0
      %p174 = por %p172, %p173
      %p175 = scmp.ne.s32.totalorder %s163, %s164
      %p176 = scmp.eq.s32.totalorder %s28, 1
      %p177 = por %p175, %p176
      %p179 = scmp.ne.s32.totalorder %s164, %s178
      %p180 = scmp.eq.s32.totalorder %s28, 0
      %p181 = por %p179, %p180
      %s183 = sadd.s32 %s182, 1
      %p186 = scmp.eq.s32.totalorder %s22, 1
      %p187 = scmp.ne.s32.totalorder %s182, %s184
      %p188 = scmp.eq.s32.totalorder %s22, 0
      %p189 = por %p187, %p188
      %p190 = scmp.ne.s32.totalorder %s182, %s184
      %p191 = scmp.eq.s32.totalorder %s27, 1
      %p192 = por %p190, %p191
      %p193 = scmp.ne.s32.totalorder %s184, %s185
      %p194 = scmp.eq.s32.totalorder %s27, 0
      %p195 = por %p193, %p194
      %p196 = scmp.ne.s32.totalorder %s184, %s185
      %p197 = scmp.eq.s32.totalorder %s28, 1
      %p198 = por %p196, %p197
      %p200 = scmp.ne.s32.totalorder %s185, %s199
      %p201 = scmp.eq.s32.totalorder %s28, 0
      %p202 = por %p200, %p201
      %s204 = sadd.s32 %s203, 1
      %p207 = scmp.eq.s32.totalorder %s22, 1
      %p208 = scmp.ne.s32.totalorder %s203, %s205
      %p209 = scmp.eq.s32.totalorder %s22, 0
      %p210 = por %p208, %p209
      %p211 = scmp.ne.s32.totalorder %s203, %s205
      %p212 = scmp.eq.s32.totalorder %s27, 1
      %p213 = por %p211, %p212
      %p214 = scmp.ne.s32.totalorder %s205, %s206
      %p215 = scmp.eq.s32.totalorder %s27, 0
      %p216 = por %p214, %p215
      %p217 = scmp.ne.s32.totalorder %s205, %s206
      %p218 = scmp.eq.s32.totalorder %s28, 1
      %p219 = por %p217, %p218
      %p221 = scmp.ne.s32.totalorder %s206, %s220
      %p222 = scmp.eq.s32.totalorder %s28, 0
      %p223 = por %p221, %p222
      %s224 = ssub.s32 %s22, %s29
      %p225 = scmp.eq.s32.totalorder %s224, 0
      %s227 = sadd.s32 %s226, 1
      %s228 = scalar_select %p225, %s226, %s227
      %p231 = pneg %p225
      %p232 = scmp.eq.s32.totalorder %s22, 1
      %p233 = por %p231, %p232
      %p234 = scmp.ne.s32.totalorder %s226, %s229
      %p235 = scmp.eq.s32.totalorder %s22, 0
      %p236 = por %p234, %p235
      %p237 = scmp.ne.s32.totalorder %s226, %s229
      %p238 = scmp.eq.s32.totalorder %s27, 1
      %p239 = por %p237, %p238
      %p240 = scmp.ne.s32.totalorder %s229, %s230
      %p241 = scmp.eq.s32.totalorder %s27, 0
      %p242 = por %p240, %p241
      %p243 = scmp.ne.s32.totalorder %s229, %s230
      %p244 = scmp.eq.s32.totalorder %s28, 1
      %p245 = por %p243, %p244
      %p247 = scmp.ne.s32.totalorder %s230, %s246
      %p248 = scmp.eq.s32.totalorder %s28, 0
      %p249 = por %p247, %p248
      %p250 = scmp.le.s32.totalorder 1, %s22
      %p251 = scmp.lt.s32.totalorder %s22, 3
      %p252 = pnand %p250, %p251
      %p253 = pneg %p252
      // Predicated region
      $region9: #{tpu_custom_call.1} parent=5 // pred_check
        _
      $region10: #{tpu_custom_call.1} parent=5 // pred_check_branch
        %255 = sbr.rel (%p252) target = $region12
      $region11: #{tpu_custom_call.1} parent=5 // pred_region
        %s256 = ssub.s32 %s22, 1
        // Predicated region
        $region13: #{tpu_custom_call.1} parent=11 // pred_check
          %p257 = pneg %p69
        $region14: #{tpu_custom_call.1} parent=11 // pred_check_branch
          %259 = sbr.rel (%p257) target = $region16
        $region15: #{tpu_custom_call.1} parent=11 // pred_region
          %261 = vsyncadd [#allocation6], 0
          %s262 = sshll.u32 %s1, 4
          %s263 = int_to_ptr.hbm [resolvable:$true] %s262
          %s264 = sshll.u32 [#allocation5], 4
          %s265 = int_to_ptr.vmem [resolvable:$true] %s264
          %270 = dma.hbm_to_vmem [thread:$0]  %s263, 1024, %s265, [#allocation6], 64, 64, 4
        $region16: #{tpu_custom_call.1} parent=11 // pred_fallthru
          _
        // Predicated region
        $region17: #{tpu_custom_call.1} parent=11 // pred_check
          %p271 = pneg %p90
        $region18: #{tpu_custom_call.1} parent=11 // pred_check_branch
          %273 = sbr.rel (%p271) target = $region20
        $region19: #{tpu_custom_call.1} parent=11 // pred_region
          _
        $region20: #{tpu_custom_call.1} parent=11 // pred_fallthru
          _
        // Predicated region
        $region21: #{tpu_custom_call.1} parent=11 // pred_check
          %p274 = pneg %p111
        $region22: #{tpu_custom_call.1} parent=11 // pred_check_branch
          %276 = sbr.rel (%p274) target = $region24
        $region23: #{tpu_custom_call.1} parent=11 // pred_region
          %278 = vsyncadd [#allocation6], 0
          %s279 = sshll.u32 %s3, 4
          %s280 = int_to_ptr.hbm [resolvable:$true] %s279
          %s281 = sshll.u32 [#allocation7], 4
          %s282 = int_to_ptr.vmem [resolvable:$true] %s281
          %287 = dma.hbm_to_vmem [thread:$0]  %s280, 1024, %s282, [#allocation6], 64, 64, 4
        $region24: #{tpu_custom_call.1} parent=11 // pred_fallthru
          _
        // Predicated region
        $region25: #{tpu_custom_call.1} parent=11 // pred_check
          %p288 = pneg %p132
        $region26: #{tpu_custom_call.1} parent=11 // pred_check_branch
          %290 = sbr.rel (%p288) target = $region28
        $region27: #{tpu_custom_call.1} parent=11 // pred_region
          _
        $region28: #{tpu_custom_call.1} parent=11 // pred_fallthru
          _
        // Predicated region
        $region29: #{tpu_custom_call.1} parent=11 // pred_check
          %p291 = pneg %p153
        $region30: #{tpu_custom_call.1} parent=11 // pred_check_branch
          %293 = sbr.rel (%p291) target = $region32
        $region31: #{tpu_custom_call.1} parent=11 // pred_region
          %295 = vsyncadd [#allocation9], 0
          %s296 = sshll.u32 %s5, 4
          %s297 = int_to_ptr.hbm [resolvable:$true] %s296
          %s298 = sshll.u32 [#allocation8], 4
          %s299 = int_to_ptr.vmem [resolvable:$true] %s298
          %304 = dma.hbm_to_vmem [thread:$0]  %s297, 1024, %s299, [#allocation9], 64, 64, 4
        $region32: #{tpu_custom_call.1} parent=11 // pred_fallthru
          _
        // Predicated region
        $region33: #{tpu_custom_call.1} parent=11 // pred_check
          %p305 = pneg %p174
        $region34: #{tpu_custom_call.1} parent=11 // pred_check_branch
          %307 = sbr.rel (%p305) target = $region36
        $region35: #{tpu_custom_call.1} parent=11 // pred_region
          _
        $region36: #{tpu_custom_call.1} parent=11 // pred_fallthru
          _
        // Predicated region
        $region37: #{tpu_custom_call.1} parent=11 // pred_check
          %p308 = pneg %p195
        $region38: #{tpu_custom_call.1} parent=11 // pred_check_branch
          %310 = sbr.rel (%p308) target = $region40
        $region39: #{tpu_custom_call.1} parent=11 // pred_region
          _
        $region40: #{tpu_custom_call.1} parent=11 // pred_fallthru
          _
        // Predicated region
        $region41: #{tpu_custom_call.1} parent=11 // pred_check
          %p311 = pneg %p216
        $region42: #{tpu_custom_call.1} parent=11 // pred_check_branch
          %313 = sbr.rel (%p311) target = $region44
        $region43: #{tpu_custom_call.1} parent=11 // pred_region
          _
        $region44: #{tpu_custom_call.1} parent=11 // pred_fallthru
          _
      $region12: #{tpu_custom_call.1} parent=5 // pred_fallthru
        _
      %p314 = scmp.lt.s32.totalorder %s22, 2
      // Predicated region
      $region45: #{tpu_custom_call.1} parent=5 // pred_check
        %p315 = pneg %p314
      $region46: #{tpu_custom_call.1} parent=5 // pred_check_branch
        %317 = sbr.rel (%p315) target = $region48
      $region47: #{tpu_custom_call.1} parent=5 // pred_region
        // Predicated region
        $region49: #{tpu_custom_call.1} parent=47 // pred_check
          %p318 = pneg %p42
        $region50: #{tpu_custom_call.1} parent=47 // pred_check_branch
          %320 = sbr.rel (%p318) target = $region52
        $region51: #{tpu_custom_call.1} parent=47 // pred_region
          %s321 = sand.u32 %s32, 1
          %s322 = scalar_lea.sflag [#allocation4], %s321
          %s323 = sand.u32 %s32, 1
          %s324 = smul.addr %s323, 8
          %s325 = scalar_lea.vmem [#allocation3], %s324
          %s326 = smul.u32 2, %s22
          %328 = vsyncadd %s322, 0
          %s329 = smul.addr %s326, 4
          %s330 = scalar_lea.hbm %s0, %s329
          %s331 = sshll.u32 %s330, 4
          %s332 = int_to_ptr.hbm [resolvable:$true] %s331
          %s333 = sshll.u32 %s325, 4
          %s334 = int_to_ptr.vmem [resolvable:$true] %s333
          %339 = dma.hbm_to_vmem [thread:$0]  %s332, 128, %s334, %s322, 64, 64, 4
        $region52: #{tpu_custom_call.1} parent=47 // pred_fallthru
          _
      $region48: #{tpu_custom_call.1} parent=5 // pred_fallthru
        _
      %p340 = scmp.le.s32.totalorder 1, %s22
      %p341 = scmp.lt.s32.totalorder %s22, 3
      %p342 = pnand %p340, %p341
      %p343 = pneg %p342
      // Predicated region
      $region53: #{tpu_custom_call.1} parent=5 // pred_check
        _
      $region54: #{tpu_custom_call.1} parent=5 // pred_check_branch
        %345 = sbr.rel (%p342) target = $region56
      $region55: #{tpu_custom_call.1} parent=5 // pred_region
        %s346 = ssub.s32 %s22, 1
        %s347 = sand.u32 %s35, 1
        %s348 = scalar_lea.sflag [#allocation4], %s347
        %s349 = sand.u32 %s35, 1
        %s350 = smul.addr %s349, 8
        %s351 = scalar_lea.vmem [#allocation3], %s350
        // Predicated region
        $region57: #{tpu_custom_call.1} parent=55 // pred_check
          %p352 = pneg %p48
        $region58: #{tpu_custom_call.1} parent=55 // pred_check_branch
          %354 = sbr.rel (%p352) target = $region60
        $region59: #{tpu_custom_call.1} parent=55 // pred_region
          %356 = dma.done %s348, 128
        $region60: #{tpu_custom_call.1} parent=55 // pred_fallthru
          _
        // Predicated region
        $region61: #{tpu_custom_call.1} parent=55 // pred_check
          %p357 = pneg %p69
        $region62: #{tpu_custom_call.1} parent=55 // pred_check_branch
          %359 = sbr.rel (%p357) target = $region64
        $region63: #{tpu_custom_call.1} parent=55 // pred_region
          %361 = dma.done [#allocation6], 1024
        $region64: #{tpu_custom_call.1} parent=55 // pred_fallthru
          _
        // Predicated region
        $region65: #{tpu_custom_call.1} parent=55 // pred_check
          %p362 = pneg %p111
        $region66: #{tpu_custom_call.1} parent=55 // pred_check_branch
          %364 = sbr.rel (%p362) target = $region68
        $region67: #{tpu_custom_call.1} parent=55 // pred_region
          %366 = dma.done [#allocation6], 1024
        $region68: #{tpu_custom_call.1} parent=55 // pred_fallthru
          _
        // Predicated region
        $region69: #{tpu_custom_call.1} parent=55 // pred_check
          %p367 = pneg %p153
        $region70: #{tpu_custom_call.1} parent=55 // pred_check_branch
          %369 = sbr.rel (%p367) target = $region72
        $region71: #{tpu_custom_call.1} parent=55 // pred_region
          %371 = dma.done [#allocation9], 1024
        $region72: #{tpu_custom_call.1} parent=55 // pred_fallthru
          _
        %s372 = sand.u32 %s35, 1
        %s373 = scalar_lea.sflag [#allocation4], %s372
        %s374 = sand.u32 %s35, 1
        %s375 = smul.addr %s374, 8
        %s376 = scalar_lea.vmem [#allocation3], %s375
        %p377 = pneg %p48
        %p378 = pneg %p45
        %p379 = pneg %p69
        %p380 = pneg %p66
        %p381 = pneg %p90
        %p382 = pneg %p87
        %p383 = pneg %p111
        %p384 = pneg %p108
        %p385 = pneg %p132
        %p386 = pneg %p129
        %p387 = pneg %p153
        %p388 = pneg %p150
        %p389 = pneg %p174
        %p390 = pneg %p171
        %p391 = pneg %p195
        %p392 = pneg %p192
        %p393 = pneg %p216
        %p394 = pneg %p213
        %p395 = pneg %p242
        %p396 = pneg %p239
        %s397 = smul.u32 2, %s27
        %p398 = scmp.lt.s32.totalorder %s397, 3
        %s399 = scalar_select %p398, %s397, 3
        %s400 = smul.addr %s399, 8
        %s401 = scalar_lea.vmem %s9, %s400
        %s402 = smul.u32 2, %s27
        %s403 = smul.u32 2, %s27
        %p404 = scmp.lt.s32.totalorder %s403, 3
        %s405 = scalar_select %p404, %s403, 3
        %s406 = smul.addr %s405, 8
        %s407 = scalar_lea.vmem %s9, %s406
        %s408 = smul.u32 2, %s27
        %v409 = vld [vmem:[%s351] sm:$0xf]
        %v410 = vld [vmem:[%s351 + $0x4] sm:$0xf]
        %v411 = vld [vmem:[#allocation5] sm:$0xf]
        %v412 = vld [vmem:[#allocation5 + $0x4] sm:$0xf]
        %v413 = vld [vmem:[#allocation5 + $0x8] sm:$0xf]
        %v414 = vld [vmem:[#allocation5 + $0xc] sm:$0xf]
        %v415 = vld [vmem:[#allocation5 + $0x10] sm:$0xf]
        %v416 = vld [vmem:[#allocation5 + $0x14] sm:$0xf]
        %v417 = vld [vmem:[#allocation5 + $0x18] sm:$0xf]
        %v418 = vld [vmem:[#allocation5 + $0x1c] sm:$0xf]
        %v419 = vld [vmem:[#allocation5 + $0x20] sm:$0xf]
        %v420 = vld [vmem:[#allocation5 + $0x24] sm:$0xf]
        %v421 = vld [vmem:[#allocation5 + $0x28] sm:$0xf]
        %v422 = vld [vmem:[#allocation5 + $0x2c] sm:$0xf]
        %v423 = vld [vmem:[#allocation5 + $0x30] sm:$0xf]
        %v424 = vld [vmem:[#allocation5 + $0x34] sm:$0xf]
        %v425 = vld [vmem:[#allocation5 + $0x38] sm:$0xf]
        %v426 = vld [vmem:[#allocation5 + $0x3c] sm:$0xf]
        %v427 = vld [vmem:[%s2] sm:$0x1]
        %v429 = vperm.slane %v427, 0
        %v433 = vunpack.c.l.b16 %v409
        %v434 = vunpack.c.l.b16 %v410
        %v435 = vpack.c.b16 %v434, %v433
        %v453 = vunpack.c.l.b16 %v411
        %v454 = vunpack.c.l.b16 %v412
        %v455 = vunpack.c.l.b16 %v413
        %v456 = vunpack.c.l.b16 %v414
        %v457 = vunpack.c.l.b16 %v415
        %v458 = vunpack.c.l.b16 %v416
        %v459 = vunpack.c.l.b16 %v417
        %v460 = vunpack.c.l.b16 %v418
        %v461 = vunpack.c.l.b16 %v419
        %v462 = vunpack.c.l.b16 %v420
        %v463 = vunpack.c.l.b16 %v421
        %v464 = vunpack.c.l.b16 %v422
        %v465 = vunpack.c.l.b16 %v423
        %v466 = vunpack.c.l.b16 %v424
        %v467 = vunpack.c.l.b16 %v425
        %v468 = vunpack.c.l.b16 %v426
        %v469 = vpack.c.b16 %v454, %v453
        %v470 = vpack.c.b16 %v456, %v455
        %v471 = vpack.c.b16 %v458, %v457
        %v472 = vpack.c.b16 %v460, %v459
        %v473 = vpack.c.b16 %v462, %v461
        %v474 = vpack.c.b16 %v464, %v463
        %v475 = vpack.c.b16 %v466, %v465
        %v476 = vpack.c.b16 %v468, %v467
        %485 = vmatpush.bf16.msra.mxu0 %v476
        %486 = vmatpush.bf16.msra.mxu0 %v475
        %487 = vmatpush.bf16.msra.mxu0 %v474
        %488 = vmatpush.bf16.msra.mxu0 %v473
        %489 = vmatpush.bf16.msra.mxu0 %v472
        %490 = vmatpush.bf16.msra.mxu0 %v471
        %491 = vmatpush.bf16.msra.mxu0 %v470
        %492 = vmatpush.bf16.msra.mxu0 %v469
        %493 = vmatmul.bf16.gmra.mxu0 %v435
        %v494 = vpop.f32.mrf.mxu0
        %v495 = vadd.f32 %v429, %v494
        %v496 = vpop.f32.mrf.mxu0
        %v497 = vadd.f32 %v429, %v496
        %498 = vdwg.mxu0
        %vm499 = vcmp.gt.f32.partialorder %v495, 0.0
        %vm500 = vcmp.gt.f32.partialorder %v497, 0.0
        %v501 = vmul.f32 %v495, 0.01
        %v502 = vmul.f32 %v497, 0.01
        %v503 = vsel %vm499, %v495, %v501
        %v504 = vsel %vm500, %v497, %v502
        %v505 = vpack.c.bf16 %v504, %v503
        %v506 = vld [vmem:[#allocation7] sm:$0xf]
        %v507 = vld [vmem:[#allocation7 + $0x4] sm:$0xf]
        %v508 = vld [vmem:[#allocation7 + $0x8] sm:$0xf]
        %v509 = vld [vmem:[#allocation7 + $0xc] sm:$0xf]
        %v510 = vld [vmem:[#allocation7 + $0x10] sm:$0xf]
        %v511 = vld [vmem:[#allocation7 + $0x14] sm:$0xf]
        %v512 = vld [vmem:[#allocation7 + $0x18] sm:$0xf]
        %v513 = vld [vmem:[#allocation7 + $0x1c] sm:$0xf]
        %v514 = vld [vmem:[#allocation7 + $0x20] sm:$0xf]
        %v515 = vld [vmem:[#allocation7 + $0x24] sm:$0xf]
        %v516 = vld [vmem:[#allocation7 + $0x28] sm:$0xf]
        %v517 = vld [vmem:[#allocation7 + $0x2c] sm:$0xf]
        %v518 = vld [vmem:[#allocation7 + $0x30] sm:$0xf]
        %v519 = vld [vmem:[#allocation7 + $0x34] sm:$0xf]
        %v520 = vld [vmem:[#allocation7 + $0x38] sm:$0xf]
        %v521 = vld [vmem:[#allocation7 + $0x3c] sm:$0xf]
        %v522 = vld [vmem:[%s4] sm:$0x1]
        %v524 = vperm.slane %v522, 0
        %v542 = vunpack.c.l.b16 %v506
        %v543 = vunpack.c.l.b16 %v507
        %v544 = vunpack.c.l.b16 %v508
        %v545 = vunpack.c.l.b16 %v509
        %v546 = vunpack.c.l.b16 %v510
        %v547 = vunpack.c.l.b16 %v511
        %v548 = vunpack.c.l.b16 %v512
        %v549 = vunpack.c.l.b16 %v513
        %v550 = vunpack.c.l.b16 %v514
        %v551 = vunpack.c.l.b16 %v515
        %v552 = vunpack.c.l.b16 %v516
        %v553 = vunpack.c.l.b16 %v517
        %v554 = vunpack.c.l.b16 %v518
        %v555 = vunpack.c.l.b16 %v519
        %v556 = vunpack.c.l.b16 %v520
        %v557 = vunpack.c.l.b16 %v521
        %v558 = vpack.c.b16 %v543, %v542
        %v559 = vpack.c.b16 %v545, %v544
        %v560 = vpack.c.b16 %v547, %v546
        %v561 = vpack.c.b16 %v549, %v548
        %v562 = vpack.c.b16 %v551, %v550
        %v563 = vpack.c.b16 %v553, %v552
        %v564 = vpack.c.b16 %v555, %v554
        %v565 = vpack.c.b16 %v557, %v556
        %574 = vmatpush.bf16.msra.mxu0 %v565
        %575 = vmatpush.bf16.msra.mxu0 %v564
        %576 = vmatpush.bf16.msra.mxu0 %v563
        %577 = vmatpush.bf16.msra.mxu0 %v562
        %578 = vmatpush.bf16.msra.mxu0 %v561
        %579 = vmatpush.bf16.msra.mxu0 %v560
        %580 = vmatpush.bf16.msra.mxu0 %v559
        %581 = vmatpush.bf16.msra.mxu0 %v558
        %582 = vmatmul.bf16.gmra.mxu0 %v505
        %v583 = vpop.f32.mrf.mxu0
        %v584 = vadd.f32 %v524, %v583
        %v585 = vpop.f32.mrf.mxu0
        %v586 = vadd.f32 %v524, %v585
        %587 = vdwg.mxu0
        %vm588 = vcmp.gt.f32.partialorder %v584, 0.0
        %vm589 = vcmp.gt.f32.partialorder %v586, 0.0
        %v590 = vmul.f32 %v584, 0.01
        %v591 = vmul.f32 %v586, 0.01
        %v592 = vsel %vm588, %v584, %v590
        %v593 = vsel %vm589, %v586, %v591
        %v594 = vpack.c.bf16 %v593, %v592
        %v595 = vld [vmem:[#allocation8] sm:$0xf]
        %v596 = vld [vmem:[#allocation8 + $0x4] sm:$0xf]
        %v597 = vld [vmem:[#allocation8 + $0x8] sm:$0xf]
        %v598 = vld [vmem:[#allocation8 + $0xc] sm:$0xf]
        %v599 = vld [vmem:[#allocation8 + $0x10] sm:$0xf]
        %v600 = vld [vmem:[#allocation8 + $0x14] sm:$0xf]
        %v601 = vld [vmem:[#allocation8 + $0x18] sm:$0xf]
        %v602 = vld [vmem:[#allocation8 + $0x1c] sm:$0xf]
        %v603 = vld [vmem:[#allocation8 + $0x20] sm:$0xf]
        %v604 = vld [vmem:[#allocation8 + $0x24] sm:$0xf]
        %v605 = vld [vmem:[#allocation8 + $0x28] sm:$0xf]
        %v606 = vld [vmem:[#allocation8 + $0x2c] sm:$0xf]
        %v607 = vld [vmem:[#allocation8 + $0x30] sm:$0xf]
        %v608 = vld [vmem:[#allocation8 + $0x34] sm:$0xf]
        %v609 = vld [vmem:[#allocation8 + $0x38] sm:$0xf]
        %v610 = vld [vmem:[#allocation8 + $0x3c] sm:$0xf]
        %v611 = vld [vmem:[%s6] sm:$0x1]
        %v613 = vperm.slane %v611, 0
        %v631 = vunpack.c.l.b16 %v595
        %v632 = vunpack.c.l.b16 %v596
        %v633 = vunpack.c.l.b16 %v597
        %v634 = vunpack.c.l.b16 %v598
        %v635 = vunpack.c.l.b16 %v599
        %v636 = vunpack.c.l.b16 %v600
        %v637 = vunpack.c.l.b16 %v601
        %v638 = vunpack.c.l.b16 %v602
        %v639 = vunpack.c.l.b16 %v603
        %v640 = vunpack.c.l.b16 %v604
        %v641 = vunpack.c.l.b16 %v605
        %v642 = vunpack.c.l.b16 %v606
        %v643 = vunpack.c.l.b16 %v607
        %v644 = vunpack.c.l.b16 %v608
        %v645 = vunpack.c.l.b16 %v609
        %v646 = vunpack.c.l.b16 %v610
        %v647 = vpack.c.b16 %v632, %v631
        %v648 = vpack.c.b16 %v634, %v633
        %v649 = vpack.c.b16 %v636, %v635
        %v650 = vpack.c.b16 %v638, %v637
        %v651 = vpack.c.b16 %v640, %v639
        %v652 = vpack.c.b16 %v642, %v641
        %v653 = vpack.c.b16 %v644, %v643
        %v654 = vpack.c.b16 %v646, %v645
        %663 = vmatpush.bf16.msra.mxu0 %v654
        %664 = vmatpush.bf16.msra.mxu0 %v653
        %665 = vmatpush.bf16.msra.mxu0 %v652
        %666 = vmatpush.bf16.msra.mxu0 %v651
        %667 = vmatpush.bf16.msra.mxu0 %v650
        %668 = vmatpush.bf16.msra.mxu0 %v649
        %669 = vmatpush.bf16.msra.mxu0 %v648
        %670 = vmatpush.bf16.msra.mxu0 %v647
        %671 = vmatmul.bf16.gmra.mxu0 %v594
        %v672 = vpop.f32.mrf.mxu0
        %v673 = vadd.f32 %v613, %v672
        %v674 = vpop.f32.mrf.mxu0
        %v675 = vadd.f32 %v613, %v674
        %676 = vdwg.mxu0
        %vm677 = vcmp.gt.f32.partialorder %v673, 0.0
        %vm678 = vcmp.gt.f32.partialorder %v675, 0.0
        %v679 = vmul.f32 %v673, 0.01
        %v680 = vmul.f32 %v675, 0.01
        %v681 = vsel %vm677, %v673, %v679
        %v682 = vsel %vm678, %v675, %v680
        %v683 = vld [vmem:[%s7] sm:$0x1]
        %v685 = vperm.slane %v683, 0
        %v687 = vmul.f32 %v681, %v685
        %v688 = vmul.f32 %v682, %v685
        %689 = vadd.xlane.f32.xlu0 %v687
        %v690 = vpop.xlane.xlu0 %689
        %691 = vadd.xlane.f32.xlu0 %v688
        %v692 = vpop.xlane.xlu0 %691
        %v693 = vld [vmem:[#allocation2] sm:$0x1]
        %v695 = vperm.slane %v693, 0
        %v697 = vadd.f32 %v690, %v695
        %v698 = vadd.f32 %v692, %v695
        %vm699 = vcmask 7168
        %700 = vst.msk [vmem:[%s407] sm:$0xff] %vm699, %v697
        %701 = vst.msk [vmem:[%s407 + $0x8] sm:$0xff] %vm699, %v698
        %s702 = smul.u32 2, %s27
        %p703 = scmp.lt.s32.totalorder %s702, 3
        %s704 = scalar_select %p703, %s702, 3
        %s705 = smul.addr %s704, 8
        %s706 = scalar_lea.vmem %s9, %s705
        // Predicated region
        $region73: #{tpu_custom_call.1} parent=55 // pred_check
          %p707 = pneg %p239
        $region74: #{tpu_custom_call.1} parent=55 // pred_check_branch
          %709 = sbr.rel (%p707) target = $region76
        $region75: #{tpu_custom_call.1} parent=55 // pred_region
          %s710 = smul.u32 2, %s27
        $region76: #{tpu_custom_call.1} parent=55 // pred_fallthru
          _
      $region56: #{tpu_custom_call.1} parent=5 // pred_fallthru
        _
      %p711 = scmp.le.s32.totalorder 2, %s22
      // Predicated region
      $region77: #{tpu_custom_call.1} parent=5 // pred_check
        %p712 = pneg %p711
      $region78: #{tpu_custom_call.1} parent=5 // pred_check_branch
        %714 = sbr.rel (%p712) target = $region80
      $region79: #{tpu_custom_call.1} parent=5 // pred_region
        %s715 = ssub.s32 %s22, 2
        // Predicated region
        $region81: #{tpu_custom_call.1} parent=79 // pred_check
          %p716 = pneg %p245
        $region82: #{tpu_custom_call.1} parent=79 // pred_check_branch
          %718 = sbr.rel (%p716) target = $region84
        $region83: #{tpu_custom_call.1} parent=79 // pred_region
          %s719 = smul.u32 2, %s28
          %p720 = scmp.lt.s32.totalorder %s719, 3
          %s721 = scalar_select %p720, %s719, 3
          %s722 = smul.addr %s721, 8
          %s723 = scalar_lea.vmem %s9, %s722
        $region84: #{tpu_custom_call.1} parent=79 // pred_fallthru
          _
      $region80: #{tpu_custom_call.1} parent=5 // pred_fallthru
        _
    $region6: #{tpu_custom_call.1} parent=1 // loop_footer
      %s26 = sadd.s32 1, %s22
    $region7: #{tpu_custom_call.1} parent=1 // loop_footer_branch
      %21 = sbr.rel target = $region3
    $region8: #{tpu_custom_call.1} parent=1 // loop_exit
      _
    %724 = vsyncpa [#allocation4], 1
    %s725 = scalar_lea.sflag [#allocation4], 1
    %726 = vsyncpa %s725, 1
    %727 = vsyncpa [#allocation6], 1
    %728 = vsyncpa [#allocation9], 1

</llo_original>
